<compile_context>
chip_gen: v7x
topology: tpu7x:2x2x1
jax: 0.10.0
libtpu: 0.0.40
codegen_flags: <defaults>
</compile_context>

<pallas_src>
import functools

import jax
import jax.numpy as jnp
from jax import lax
from jax.experimental import pallas as pl
from jax.experimental.pallas import tpu as pltpu


# ----------------------------------------------------------------------------
# Kernel
# ----------------------------------------------------------------------------
def _layer_norm(z, gamma, beta, eps=1e-5):
    mu = jnp.mean(z, axis=-1, keepdims=True)
    var = jnp.mean((z - mu) * (z - mu), axis=-1, keepdims=True)
    return (z - mu) * lax.rsqrt(var + eps) * gamma + beta


def _transformer_block_kernel(
    x_ref,       # (bb, t, d)            f32
    wqkv_ref,    # (d, 3*n_h*d)          bf16, [Q|K|V], 1/d**.25 folded into Q,K
    wu_ref,      # (n_h*d, d)            bf16
    w1_ref,      # (d, n_hidden*d)       bf16
    w2_ref,      # (n_hidden*d, d)       bf16
    vec_ref,     # (8, vec_w)            f32 packed: bu, g0, be0, b1, b2, g1, be1, 0
    o_ref,       # (bb, t, d)            f32
    *, n_heads, do_mask):
    bb, t, d = x_ref.shape
    H = n_heads * d
    hdim = w1_ref.shape[1]

    x32 = x_ref[...].astype(jnp.float32).reshape(bb * t, d)    # residual path
    x_bf = x32.astype(jnp.bfloat16)                            # MXU operand

    vecs = vec_ref[...].astype(jnp.float32)
    bu  = vecs[0:1, :d]
    g0  = vecs[1:2, :d]
    be0 = vecs[2:3, :d]
    b1  = vecs[3:4, :hdim]
    b2  = vecs[4:5, :d]
    g1  = vecs[5:6, :d]
    be1 = vecs[6:7, :d]

    # ---- fused, lane-dense QKV projection: one (bb*t,d) @ (d,3H) bf16 matmul
    qkv = jnp.dot(x_bf, wqkv_ref[...], preferred_element_type=jnp.float32)
    q_all = qkv[:, 0:H].astype(jnp.bfloat16)      # scale folded into weights
    k_all = qkv[:, H:2 * H].astype(jnp.bfloat16)
    v_all = qkv[:, 2 * H:3 * H].astype(jnp.bfloat16)

    # Causal mask hoisted out of the head loop (built once).
    if do_mask:
        row = lax.broadcasted_iota(jnp.int32, (bb, t, t), 1)
        col = lax.broadcasted_iota(jnp.int32, (bb, t, t), 2)
        causal_mask = col > row   # finite fill below avoids inf-inf NaN

    # ---- wide self-attention; collect head outputs for one union matmul ----
    ys = []
    for h in range(n_heads):
        lo, hi = h * d, (h + 1) * d
        q = q_all[:, lo:hi].reshape(bb, t, d)
        k = k_all[:, lo:hi].reshape(bb, t, d)
        v = v_all[:, lo:hi].reshape(bb, t, d)

        s = jnp.einsum('bqd,bkd->bqk', q, k,
                       preferred_element_type=jnp.float32)     # (bb, t, t) f32
        if do_mask:
            s = jnp.where(causal_mask, -1e30, s)
        s = s - jnp.max(s, axis=-1, keepdims=True)
        p = jnp.exp(s)                                         # f32 EUP
        p = p * pl.reciprocal(jnp.sum(p, axis=-1, keepdims=True), approx=True)

        y = jnp.einsum('bqk,bkd->bqd', p.astype(jnp.bfloat16), v,
                       preferred_element_type=jnp.float32)     # (bb, t, d)
        ys.append(y.reshape(bb * t, d))

    # Single K = n_heads*d union projection (no serial per-head accumulate).
    y_all = jnp.concatenate(ys, axis=-1).astype(jnp.bfloat16)  # (bb*t, H)
    attn = jnp.dot(y_all, wu_ref[...],
                   preferred_element_type=jnp.float32) + bu    # (bb*t, d)

    # ---- residual + LayerNorm 0 (dropout = identity, eval mode) ----
    z = _layer_norm(attn + x32, g0, be0)                       # f32

    # ---- feed-forward network (bf16 MXU operands, f32 accumulate) ----
    h1 = jnp.maximum(
        jnp.dot(z.astype(jnp.bfloat16), w1_ref[...],
                preferred_element_type=jnp.float32) + b1, 0.0)
    w_out = jnp.dot(h1.astype(jnp.bfloat16), w2_ref[...],
                    preferred_element_type=jnp.float32) + b2

    # ---- residual + LayerNorm 1 (dropout = identity, eval mode) ----
    z2 = _layer_norm(w_out + z, g1, be1)

    o_ref[...] = z2.reshape(bb, t, d).astype(o_ref.dtype)


# ----------------------------------------------------------------------------
# One-time parameter packing (hoisted out of the forward path)
# ----------------------------------------------------------------------------
def pack_params(params, *, n_heads):
    """Fold the attention scale, fuse QKV, cast weights to bf16 and pack the
    seven small vectors into one (8, vec_w) f32 slab.  Call ONCE; the result
    is what `transformer_block` consumes every forward call."""
    (wq, wk, wv, wu, bu, g0, be0, w1, b1, w2, b2, g1, be1) = params
    d = wq.shape[0]
    hdim = w1.shape[1]

    scale = 1.0 / (float(d) ** 0.25)
    wqkv = jnp.concatenate([wq * scale, wk * scale, wv],
                           axis=1).astype(jnp.bfloat16)        # (d, 3*n_h*d)
    wu_bf = wu.astype(jnp.bfloat16)                            # (n_h*d, d)
    w1_bf = w1.astype(jnp.bfloat16)                            # (d, hdim)
    w2_bf = w2.astype(jnp.bfloat16)                            # (hdim, d)

    vec_w = 128 * ((max(d, hdim) + 127) // 128)
    def _row(v, n):
        return jnp.pad(v.astype(jnp.float32).reshape(-1)[:n], (0, vec_w - n))
    vecs = jnp.stack([
        _row(bu, d), _row(g0, d), _row(be0, d), _row(b1, hdim),
        _row(b2, d), _row(g1, d), _row(be1, d),
        jnp.zeros((vec_w,), jnp.float32)], axis=0)             # (8, vec_w)

    return (wqkv, wu_bf, w1_bf, w2_bf, vecs)


# ----------------------------------------------------------------------------
# Forward wrapper (steady-state path: just the pallas_call)
# ----------------------------------------------------------------------------
def transformer_block(x, packed, *, n_heads, do_mask=False, batch_block=None):
    """batch_block=None -> whole batch in one grid step (right choice on
    v5e/v6e, and on v7x at small sizes).  Only set batch_block (e.g. bz//2 on
    v7x) when per-core work is >= ~128 token-rows (batch_block * t >= 128);
    below that the per-grid-step overhead and duplicated weight DMAs lose."""
    bz, t, d = x.shape
    wqkv, wu, w1, w2, vecs = packed

    bb = bz if batch_block is None else batch_block
    assert bz % bb == 0, "batch_block must divide batch size"
    nb = bz // bb

    kernel = functools.partial(
        _transformer_block_kernel, n_heads=n_heads, do_mask=do_mask)

    full = lambda a: pl.BlockSpec(a.shape, lambda i: (0,) * a.ndim)

    return pl.pallas_call(
        kernel,
        out_shape=jax.ShapeDtypeStruct((bz, t, d), x.dtype),
        grid_spec=pltpu.PrefetchScalarGridSpec(
            num_scalar_prefetch=0,
            grid=(nb,),
            in_specs=[
                pl.BlockSpec((bb, t, d), lambda i: (i, 0, 0)),   # x
                full(wqkv), full(wu), full(w1), full(w2), full(vecs),
            ],
            out_specs=pl.BlockSpec((bb, t, d), lambda i: (i, 0, 0)),
        ),
        compiler_params=pltpu.CompilerParams(
            dimension_semantics=("parallel",)),
    )(x, wqkv, wu, w1, w2, vecs)


# ----------------------------------------------------------------------------
# Pure-JAX reference (mirrors the PyTorch forward, eval mode, f32 exact)
# ----------------------------------------------------------------------------
def transformer_block_ref(x, params, *, n_heads, do_mask=False):
    (wq, wk, wv, wu, bu, g0, be0, w1, b1, w2, b2, g1, be1) = params
    bz, t, d = x.shape
    scale = 1.0 / (float(d) ** 0.25)

    def proj(w):   # (bz, t, n_h*d) -> (bz, n_h, t, d)
        y = (x @ w).reshape(bz, t, n_heads, d)
        return jnp.transpose(y, (0, 2, 1, 3))

    q, k, v = proj(wq) * scale, proj(wk) * scale, proj(wv)
    s = jnp.einsum('bhqd,bhkd->bhqk', q, k)
    if do_mask:
        row = lax.broadcasted_iota(jnp.int32, (t, t), 0)
        col = lax.broadcasted_iota(jnp.int32, (t, t), 1)
        s = jnp.where(col > row, -jnp.inf, s)
    p = jax.nn.softmax(s, axis=-1)
    y = jnp.einsum('bhqk,bhkd->bhqd', p, v)
    y = jnp.transpose(y, (0, 2, 1, 3)).reshape(bz, t, n_heads * d)
    attn = y @ wu + bu[0]

    def ln(z, g, b, eps=1e-5):
        mu = z.mean(-1, keepdims=True)
        var = ((z - mu) ** 2).mean(-1, keepdims=True)
        return (z - mu) / jnp.sqrt(var + eps) * g + b

    z = ln(attn + x, g0[0], be0[0])
    h1 = jax.nn.relu(z @ w1 + b1[0])
    w_out = h1 @ w2 + b2[0]
    return ln(w_out + z, g1[0], be1[0])


# ----------------------------------------------------------------------------
# Main
# ----------------------------------------------------------------------------
if __name__ == "__main__":
    emb_dim, n_heads, n_hidden = 32, 4, 2
    bz, t = 2, 8

    key = jax.random.PRNGKey(0)
    keys = jax.random.split(key, 12)
    std = 0.05
    f32 = jnp.float32

    x = jax.random.normal(keys[0], (bz, t, emb_dim), f32)

    wq = jax.random.normal(keys[1], (emb_dim, n_heads * emb_dim), f32) * std
    wk = jax.random.normal(keys[2], (emb_dim, n_heads * emb_dim), f32) * std
    wv = jax.random.normal(keys[3], (emb_dim, n_heads * emb_dim), f32) * std
    wu = jax.random.normal(keys[4], (n_heads * emb_dim, emb_dim), f32) * std
    bu = jax.random.normal(keys[5], (1, emb_dim), f32) * std
    g0 = jnp.ones((1, emb_dim), f32)          # LayerNorm default weight
    be0 = jnp.zeros((1, emb_dim), f32)        # LayerNorm default bias
    w1 = jax.random.normal(keys[6], (emb_dim, n_hidden * emb_dim), f32) * std
    b1 = jax.random.normal(keys[7], (1, n_hidden * emb_dim), f32) * std
    w2 = jax.random.normal(keys[8], (n_hidden * emb_dim, emb_dim), f32) * std
    b2 = jax.random.normal(keys[9], (1, emb_dim), f32) * std
    g1 = jnp.ones((1, emb_dim), f32)
    be1 = jnp.zeros((1, emb_dim), f32)

    params = (wq, wk, wv, wu, bu, g0, be0, w1, b1, w2, b2, g1, be1)

    # One-time packing (out of the per-call forward path, per perf review).
    packed = jax.tree_util.tree_map(jax.block_until_ready,
                                    pack_params(params, n_heads=n_heads))

    out = transformer_block(x, packed, n_heads=n_heads, do_mask=False)
    out = jax.block_until_ready(out)

    ref = transformer_block_ref(x, params, n_heads=n_heads, do_mask=False)
    assert out.shape == (bz, t, emb_dim)
    # Tolerance 2e-2: matmul operands are bf16 (f32 accumulation) and the
    # softmax denominator uses the EUP approximate reciprocal, per the perf
    # review; softmax / LayerNorm / residual math is f32.
    assert jnp.allclose(out, ref, atol=2e-2, rtol=2e-2), "mismatch vs reference"

    print("KERNEL_OK")
</pallas_src>

<mosaic_0001>
module attributes {stable_mosaic.version = 11 : i64} {
  func.func @_transformer_block_kernel(%arg0: i32, %arg1: memref<2x8x32xf32, #tpu.memory_space<vmem>>, %arg2: memref<32x384xbf16, #tpu.memory_space<vmem>>, %arg3: memref<128x32xbf16, #tpu.memory_space<vmem>>, %arg4: memref<32x64xbf16, #tpu.memory_space<vmem>>, %arg5: memref<64x32xbf16, #tpu.memory_space<vmem>>, %arg6: memref<8x128xf32, #tpu.memory_space<vmem>>, %arg7: memref<2x8x32xf32, #tpu.memory_space<vmem>>) attributes {dimension_semantics = [#tpu.dimension_semantics<parallel>], iteration_bounds = array<i64: 1>, scalar_prefetch = 0 : i64, scratch_operands = 0 : i64, tpu.core_type = #tpu.core_type<tc>, window_params = [{transform_indices = @transform_0, window_bounds = array<i64: 2, 8, 32>}, {pipeline_mode = #tpu.pipeline_mode<synchronous>, transform_indices = @transform_1, window_bounds = array<i64: 32, 384>}, {pipeline_mode = #tpu.pipeline_mode<synchronous>, transform_indices = @transform_2, window_bounds = array<i64: 128, 32>}, {pipeline_mode = #tpu.pipeline_mode<synchronous>, transform_indices = @transform_3, window_bounds = array<i64: 32, 64>}, {pipeline_mode = #tpu.pipeline_mode<synchronous>, transform_indices = @transform_4, window_bounds = array<i64: 64, 32>}, {pipeline_mode = #tpu.pipeline_mode<synchronous>, transform_indices = @transform_5, window_bounds = array<i64: 8, 128>}, {transform_indices = @transform_6, window_bounds = array<i64: 2, 8, 32>}]} {
    %c0 = arith.constant 0 : index
    %c0_0 = arith.constant 0 : index
    %c0_1 = arith.constant 0 : index
    %0 = vector.load %arg1[%c0, %c0_0, %c0_1] : memref<2x8x32xf32, #tpu.memory_space<vmem>>, vector<2x8x32xf32>
    %1 = vector.shape_cast %0 : vector<2x8x32xf32> to vector<16x32xf32>
    %2 = arith.truncf %1 : vector<16x32xf32> to vector<16x32xbf16>
    %c0_2 = arith.constant 0 : index
    %c0_3 = arith.constant 0 : index
    %3 = vector.load %arg6[%c0_2, %c0_3] : memref<8x128xf32, #tpu.memory_space<vmem>>, vector<8x128xf32>
    %4 = vector.extract_strided_slice %3 {offsets = [0, 0], sizes = [1, 32], strides = [1, 1]} : vector<8x128xf32> to vector<1x32xf32>
    %5 = vector.extract_strided_slice %3 {offsets = [1, 0], sizes = [1, 32], strides = [1, 1]} : vector<8x128xf32> to vector<1x32xf32>
    %6 = vector.extract_strided_slice %3 {offsets = [2, 0], sizes = [1, 32], strides = [1, 1]} : vector<8x128xf32> to vector<1x32xf32>
    %7 = vector.extract_strided_slice %3 {offsets = [3, 0], sizes = [1, 64], strides = [1, 1]} : vector<8x128xf32> to vector<1x64xf32>
    %8 = vector.extract_strided_slice %3 {offsets = [4, 0], sizes = [1, 32], strides = [1, 1]} : vector<8x128xf32> to vector<1x32xf32>
    %9 = vector.extract_strided_slice %3 {offsets = [5, 0], sizes = [1, 32], strides = [1, 1]} : vector<8x128xf32> to vector<1x32xf32>
    %10 = vector.extract_strided_slice %3 {offsets = [6, 0], sizes = [1, 32], strides = [1, 1]} : vector<8x128xf32> to vector<1x32xf32>
    %c0_4 = arith.constant 0 : index
    %c0_5 = arith.constant 0 : index
    %11 = vector.load %arg2[%c0_4, %c0_5] : memref<32x384xbf16, #tpu.memory_space<vmem>>, vector<32x384xbf16>
    %cst = arith.constant dense<0.000000e+00> : vector<16x384xf32>
    %12 = tpu.matmul %2, %11, %cst {dimension_numbers = #tpu.dot_dimension_numbers<[1], [0], [0], [1], [0, 0, 1, 1], [], []>} : vector<16x32xbf16>, vector<32x384xbf16>, vector<16x384xf32> -> vector<16x384xf32>
    %13 = vector.extract_strided_slice %12 {offsets = [0, 0], sizes = [16, 128], strides = [1, 1]} : vector<16x384xf32> to vector<16x128xf32>
    %14 = arith.truncf %13 : vector<16x128xf32> to vector<16x128xbf16>
    %15 = vector.extract_strided_slice %12 {offsets = [0, 128], sizes = [16, 128], strides = [1, 1]} : vector<16x384xf32> to vector<16x128xf32>
    %16 = arith.truncf %15 : vector<16x128xf32> to vector<16x128xbf16>
    %17 = vector.extract_strided_slice %12 {offsets = [0, 256], sizes = [16, 128], strides = [1, 1]} : vector<16x384xf32> to vector<16x128xf32>
    %18 = arith.truncf %17 : vector<16x128xf32> to vector<16x128xbf16>
    %19 = vector.extract_strided_slice %14 {offsets = [0, 0], sizes = [16, 32], strides = [1, 1]} : vector<16x128xbf16> to vector<16x32xbf16>
    %20 = vector.shape_cast %19 : vector<16x32xbf16> to vector<2x8x32xbf16>
    %21 = vector.extract_strided_slice %16 {offsets = [0, 0], sizes = [16, 32], strides = [1, 1]} : vector<16x128xbf16> to vector<16x32xbf16>
    %22 = vector.shape_cast %21 : vector<16x32xbf16> to vector<2x8x32xbf16>
    %23 = vector.extract_strided_slice %18 {offsets = [0, 0], sizes = [16, 32], strides = [1, 1]} : vector<16x128xbf16> to vector<16x32xbf16>
    %24 = vector.shape_cast %23 : vector<16x32xbf16> to vector<2x8x32xbf16>
    "tpu.trace_start"() <{level = 10 : i32, message = "bqd,bkd->bqk"}> : () -> ()
    %cst_6 = arith.constant dense<0.000000e+00> : vector<2x8x8xf32>
    %25 = tpu.matmul %20, %22, %cst_6 {dimension_numbers = #tpu.dot_dimension_numbers<[2], [2], [1], [1], [0, 0, 0, 1, 1, 1], [0], [0]>} : vector<2x8x32xbf16>, vector<2x8x32xbf16>, vector<2x8x8xf32> -> vector<2x8x8xf32>
    "tpu.trace_stop"() : () -> ()
    %cst_7 = arith.constant dense<0xFF800000> : vector<2x8xf32>
    %26 = vector.multi_reduction <maximumf>, %25, %cst_7 [2] : vector<2x8x8xf32> to vector<2x8xf32>
    %27 = vector.shape_cast %26 : vector<2x8xf32> to vector<2x8x1xf32>
    %28 = vector.broadcast %27 : vector<2x8x1xf32> to vector<2x8x8xf32>
    %29 = arith.subf %25, %28 : vector<2x8x8xf32>
    %30 = math.exp %29 : vector<2x8x8xf32>
    %cst_8 = arith.constant dense<0.000000e+00> : vector<2x8xf32>
    %31 = vector.multi_reduction <add>, %30, %cst_8 [2] : vector<2x8x8xf32> to vector<2x8xf32>
    %32 = vector.shape_cast %31 : vector<2x8xf32> to vector<2x8x1xf32>
    %33 = tpu.reciprocal %32 {approx = true} : vector<2x8x1xf32> -> vector<2x8x1xf32>
    %34 = vector.broadcast %33 : vector<2x8x1xf32> to vector<2x8x8xf32>
    %35 = arith.mulf %30, %34 : vector<2x8x8xf32>
    %36 = arith.truncf %35 : vector<2x8x8xf32> to vector<2x8x8xbf16>
    "tpu.trace_start"() <{level = 10 : i32, message = "bqk,bkd->bqd"}> : () -> ()
    %cst_9 = arith.constant dense<0.000000e+00> : vector<2x8x32xf32>
    %37 = tpu.matmul %36, %24, %cst_9 {dimension_numbers = #tpu.dot_dimension_numbers<[2], [1], [1], [2], [0, 0, 0, 1, 1, 2], [0], [0]>} : vector<2x8x8xbf16>, vector<2x8x32xbf16>, vector<2x8x32xf32> -> vector<2x8x32xf32>
    "tpu.trace_stop"() : () -> ()
    %38 = vector.shape_cast %37 : vector<2x8x32xf32> to vector<16x32xf32>
    %39 = vector.extract_strided_slice %14 {offsets = [0, 32], sizes = [16, 32], strides = [1, 1]} : vector<16x128xbf16> to vector<16x32xbf16>
    %40 = vector.shape_cast %39 : vector<16x32xbf16> to vector<2x8x32xbf16>
    %41 = vector.extract_strided_slice %16 {offsets = [0, 32], sizes = [16, 32], strides = [1, 1]} : vector<16x128xbf16> to vector<16x32xbf16>
    %42 = vector.shape_cast %41 : vector<16x32xbf16> to vector<2x8x32xbf16>
    %43 = vector.extract_strided_slice %18 {offsets = [0, 32], sizes = [16, 32], strides = [1, 1]} : vector<16x128xbf16> to vector<16x32xbf16>
    %44 = vector.shape_cast %43 : vector<16x32xbf16> to vector<2x8x32xbf16>
    "tpu.trace_start"() <{level = 10 : i32, message = "bqd,bkd->bqk"}> : () -> ()
    %cst_10 = arith.constant dense<0.000000e+00> : vector<2x8x8xf32>
    %45 = tpu.matmul %40, %42, %cst_10 {dimension_numbers = #tpu.dot_dimension_numbers<[2], [2], [1], [1], [0, 0, 0, 1, 1, 1], [0], [0]>} : vector<2x8x32xbf16>, vector<2x8x32xbf16>, vector<2x8x8xf32> -> vector<2x8x8xf32>
    "tpu.trace_stop"() : () -> ()
    %cst_11 = arith.constant dense<0xFF800000> : vector<2x8xf32>
    %46 = vector.multi_reduction <maximumf>, %45, %cst_11 [2] : vector<2x8x8xf32> to vector<2x8xf32>
    %47 = vector.shape_cast %46 : vector<2x8xf32> to vector<2x8x1xf32>
    %48 = vector.broadcast %47 : vector<2x8x1xf32> to vector<2x8x8xf32>
    %49 = arith.subf %45, %48 : vector<2x8x8xf32>
    %50 = math.exp %49 : vector<2x8x8xf32>
    %cst_12 = arith.constant dense<0.000000e+00> : vector<2x8xf32>
    %51 = vector.multi_reduction <add>, %50, %cst_12 [2] : vector<2x8x8xf32> to vector<2x8xf32>
    %52 = vector.shape_cast %51 : vector<2x8xf32> to vector<2x8x1xf32>
    %53 = tpu.reciprocal %52 {approx = true} : vector<2x8x1xf32> -> vector<2x8x1xf32>
    %54 = vector.broadcast %53 : vector<2x8x1xf32> to vector<2x8x8xf32>
    %55 = arith.mulf %50, %54 : vector<2x8x8xf32>
    %56 = arith.truncf %55 : vector<2x8x8xf32> to vector<2x8x8xbf16>
    "tpu.trace_start"() <{level = 10 : i32, message = "bqk,bkd->bqd"}> : () -> ()
    %cst_13 = arith.constant dense<0.000000e+00> : vector<2x8x32xf32>
    %57 = tpu.matmul %56, %44, %cst_13 {dimension_numbers = #tpu.dot_dimension_numbers<[2], [1], [1], [2], [0, 0, 0, 1, 1, 2], [0], [0]>} : vector<2x8x8xbf16>, vector<2x8x32xbf16>, vector<2x8x32xf32> -> vector<2x8x32xf32>
    "tpu.trace_stop"() : () -> ()
    %58 = vector.shape_cast %57 : vector<2x8x32xf32> to vector<16x32xf32>
    %59 = vector.extract_strided_slice %14 {offsets = [0, 64], sizes = [16, 32], strides = [1, 1]} : vector<16x128xbf16> to vector<16x32xbf16>
    %60 = vector.shape_cast %59 : vector<16x32xbf16> to vector<2x8x32xbf16>
    %61 = vector.extract_strided_slice %16 {offsets = [0, 64], sizes = [16, 32], strides = [1, 1]} : vector<16x128xbf16> to vector<16x32xbf16>
    %62 = vector.shape_cast %61 : vector<16x32xbf16> to vector<2x8x32xbf16>
    %63 = vector.extract_strided_slice %18 {offsets = [0, 64], sizes = [16, 32], strides = [1, 1]} : vector<16x128xbf16> to vector<16x32xbf16>
    %64 = vector.shape_cast %63 : vector<16x32xbf16> to vector<2x8x32xbf16>
    "tpu.trace_start"() <{level = 10 : i32, message = "bqd,bkd->bqk"}> : () -> ()
    %cst_14 = arith.constant dense<0.000000e+00> : vector<2x8x8xf32>
    %65 = tpu.matmul %60, %62, %cst_14 {dimension_numbers = #tpu.dot_dimension_numbers<[2], [2], [1], [1], [0, 0, 0, 1, 1, 1], [0], [0]>} : vector<2x8x32xbf16>, vector<2x8x32xbf16>, vector<2x8x8xf32> -> vector<2x8x8xf32>
    "tpu.trace_stop"() : () -> ()
    %cst_15 = arith.constant dense<0xFF800000> : vector<2x8xf32>
    %66 = vector.multi_reduction <maximumf>, %65, %cst_15 [2] : vector<2x8x8xf32> to vector<2x8xf32>
    %67 = vector.shape_cast %66 : vector<2x8xf32> to vector<2x8x1xf32>
    %68 = vector.broadcast %67 : vector<2x8x1xf32> to vector<2x8x8xf32>
    %69 = arith.subf %65, %68 : vector<2x8x8xf32>
    %70 = math.exp %69 : vector<2x8x8xf32>
    %cst_16 = arith.constant dense<0.000000e+00> : vector<2x8xf32>
    %71 = vector.multi_reduction <add>, %70, %cst_16 [2] : vector<2x8x8xf32> to vector<2x8xf32>
    %72 = vector.shape_cast %71 : vector<2x8xf32> to vector<2x8x1xf32>
    %73 = tpu.reciprocal %72 {approx = true} : vector<2x8x1xf32> -> vector<2x8x1xf32>
    %74 = vector.broadcast %73 : vector<2x8x1xf32> to vector<2x8x8xf32>
    %75 = arith.mulf %70, %74 : vector<2x8x8xf32>
    %76 = arith.truncf %75 : vector<2x8x8xf32> to vector<2x8x8xbf16>
    "tpu.trace_start"() <{level = 10 : i32, message = "bqk,bkd->bqd"}> : () -> ()
    %cst_17 = arith.constant dense<0.000000e+00> : vector<2x8x32xf32>
    %77 = tpu.matmul %76, %64, %cst_17 {dimension_numbers = #tpu.dot_dimension_numbers<[2], [1], [1], [2], [0, 0, 0, 1, 1, 2], [0], [0]>} : vector<2x8x8xbf16>, vector<2x8x32xbf16>, vector<2x8x32xf32> -> vector<2x8x32xf32>
    "tpu.trace_stop"() : () -> ()
    %78 = vector.shape_cast %77 : vector<2x8x32xf32> to vector<16x32xf32>
    %79 = vector.extract_strided_slice %14 {offsets = [0, 96], sizes = [16, 32], strides = [1, 1]} : vector<16x128xbf16> to vector<16x32xbf16>
    %80 = vector.shape_cast %79 : vector<16x32xbf16> to vector<2x8x32xbf16>
    %81 = vector.extract_strided_slice %16 {offsets = [0, 96], sizes = [16, 32], strides = [1, 1]} : vector<16x128xbf16> to vector<16x32xbf16>
    %82 = vector.shape_cast %81 : vector<16x32xbf16> to vector<2x8x32xbf16>
    %83 = vector.extract_strided_slice %18 {offsets = [0, 96], sizes = [16, 32], strides = [1, 1]} : vector<16x128xbf16> to vector<16x32xbf16>
    %84 = vector.shape_cast %83 : vector<16x32xbf16> to vector<2x8x32xbf16>
    "tpu.trace_start"() <{level = 10 : i32, message = "bqd,bkd->bqk"}> : () -> ()
    %cst_18 = arith.constant dense<0.000000e+00> : vector<2x8x8xf32>
    %85 = tpu.matmul %80, %82, %cst_18 {dimension_numbers = #tpu.dot_dimension_numbers<[2], [2], [1], [1], [0, 0, 0, 1, 1, 1], [0], [0]>} : vector<2x8x32xbf16>, vector<2x8x32xbf16>, vector<2x8x8xf32> -> vector<2x8x8xf32>
    "tpu.trace_stop"() : () -> ()
    %cst_19 = arith.constant dense<0xFF800000> : vector<2x8xf32>
    %86 = vector.multi_reduction <maximumf>, %85, %cst_19 [2] : vector<2x8x8xf32> to vector<2x8xf32>
    %87 = vector.shape_cast %86 : vector<2x8xf32> to vector<2x8x1xf32>
    %88 = vector.broadcast %87 : vector<2x8x1xf32> to vector<2x8x8xf32>
    %89 = arith.subf %85, %88 : vector<2x8x8xf32>
    %90 = math.exp %89 : vector<2x8x8xf32>
    %cst_20 = arith.constant dense<0.000000e+00> : vector<2x8xf32>
    %91 = vector.multi_reduction <add>, %90, %cst_20 [2] : vector<2x8x8xf32> to vector<2x8xf32>
    %92 = vector.shape_cast %91 : vector<2x8xf32> to vector<2x8x1xf32>
    %93 = tpu.reciprocal %92 {approx = true} : vector<2x8x1xf32> -> vector<2x8x1xf32>
    %94 = vector.broadcast %93 : vector<2x8x1xf32> to vector<2x8x8xf32>
    %95 = arith.mulf %90, %94 : vector<2x8x8xf32>
    %96 = arith.truncf %95 : vector<2x8x8xf32> to vector<2x8x8xbf16>
    "tpu.trace_start"() <{level = 10 : i32, message = "bqk,bkd->bqd"}> : () -> ()
    %cst_21 = arith.constant dense<0.000000e+00> : vector<2x8x32xf32>
    %97 = tpu.matmul %96, %84, %cst_21 {dimension_numbers = #tpu.dot_dimension_numbers<[2], [1], [1], [2], [0, 0, 0, 1, 1, 2], [0], [0]>} : vector<2x8x8xbf16>, vector<2x8x32xbf16>, vector<2x8x32xf32> -> vector<2x8x32xf32>
    "tpu.trace_stop"() : () -> ()
    %98 = vector.shape_cast %97 : vector<2x8x32xf32> to vector<16x32xf32>
    %99 = tpu.concatenate %38, %58, %78, %98 in 1 : vector<16x32xf32>, vector<16x32xf32>, vector<16x32xf32>, vector<16x32xf32> -> vector<16x128xf32>
    %100 = arith.truncf %99 : vector<16x128xf32> to vector<16x128xbf16>
    %c0_22 = arith.constant 0 : index
    %c0_23 = arith.constant 0 : index
    %101 = vector.load %arg3[%c0_22, %c0_23] : memref<128x32xbf16, #tpu.memory_space<vmem>>, vector<128x32xbf16>
    %cst_24 = arith.constant dense<0.000000e+00> : vector<16x32xf32>
    %102 = tpu.matmul %100, %101, %cst_24 {dimension_numbers = #tpu.dot_dimension_numbers<[1], [0], [0], [1], [0, 0, 1, 1], [], []>} : vector<16x128xbf16>, vector<128x32xbf16>, vector<16x32xf32> -> vector<16x32xf32>
    %103 = vector.broadcast %4 : vector<1x32xf32> to vector<16x32xf32>
    %104 = arith.addf %102, %103 : vector<16x32xf32>
    %105 = arith.addf %104, %1 : vector<16x32xf32>
    %cst_25 = arith.constant dense<0.000000e+00> : vector<16xf32>
    %106 = vector.multi_reduction <add>, %105, %cst_25 [1] : vector<16x32xf32> to vector<16xf32>
    %107 = vector.shape_cast %106 : vector<16xf32> to vector<16x1xf32>
    %cst_26 = arith.constant 3.200000e+01 : f32
    %108 = vector.broadcast %cst_26 : f32 to vector<16x1xf32>
    %109 = arith.divf %107, %108 : vector<16x1xf32>
    %110 = vector.broadcast %109 : vector<16x1xf32> to vector<16x32xf32>
    %111 = arith.subf %105, %110 : vector<16x32xf32>
    %112 = vector.broadcast %109 : vector<16x1xf32> to vector<16x32xf32>
    %113 = arith.subf %105, %112 : vector<16x32xf32>
    %114 = arith.mulf %111, %113 : vector<16x32xf32>
    %cst_27 = arith.constant dense<0.000000e+00> : vector<16xf32>
    %115 = vector.multi_reduction <add>, %114, %cst_27 [1] : vector<16x32xf32> to vector<16xf32>
    %116 = vector.shape_cast %115 : vector<16xf32> to vector<16x1xf32>
    %cst_28 = arith.constant 3.200000e+01 : f32
    %117 = vector.broadcast %cst_28 : f32 to vector<16x1xf32>
    %118 = arith.divf %116, %117 : vector<16x1xf32>
    %119 = vector.broadcast %109 : vector<16x1xf32> to vector<16x32xf32>
    %120 = arith.subf %105, %119 : vector<16x32xf32>
    %cst_29 = arith.constant 9.99999974E-6 : f32
    %121 = vector.broadcast %cst_29 : f32 to vector<16x1xf32>
    %122 = arith.addf %118, %121 : vector<16x1xf32>
    %123 = math.rsqrt %122 : vector<16x1xf32>
    %124 = vector.broadcast %123 : vector<16x1xf32> to vector<16x32xf32>
    %125 = arith.mulf %120, %124 : vector<16x32xf32>
    %126 = vector.broadcast %5 : vector<1x32xf32> to vector<16x32xf32>
    %127 = arith.mulf %125, %126 : vector<16x32xf32>
    %128 = vector.broadcast %6 : vector<1x32xf32> to vector<16x32xf32>
    %129 = arith.addf %127, %128 : vector<16x32xf32>
    %130 = arith.truncf %129 : vector<16x32xf32> to vector<16x32xbf16>
    %c0_30 = arith.constant 0 : index
    %c0_31 = arith.constant 0 : index
    %131 = vector.load %arg4[%c0_30, %c0_31] : memref<32x64xbf16, #tpu.memory_space<vmem>>, vector<32x64xbf16>
    %cst_32 = arith.constant dense<0.000000e+00> : vector<16x64xf32>
    %132 = tpu.matmul %130, %131, %cst_32 {dimension_numbers = #tpu.dot_dimension_numbers<[1], [0], [0], [1], [0, 0, 1, 1], [], []>} : vector<16x32xbf16>, vector<32x64xbf16>, vector<16x64xf32> -> vector<16x64xf32>
    %133 = vector.broadcast %7 : vector<1x64xf32> to vector<16x64xf32>
    %134 = arith.addf %132, %133 : vector<16x64xf32>
    %cst_33 = arith.constant 0.000000e+00 : f32
    %135 = vector.broadcast %cst_33 : f32 to vector<16x64xf32>
    %136 = arith.maximumf %134, %135 : vector<16x64xf32>
    %137 = arith.truncf %136 : vector<16x64xf32> to vector<16x64xbf16>
    %c0_34 = arith.constant 0 : index
    %c0_35 = arith.constant 0 : index
    %138 = vector.load %arg5[%c0_34, %c0_35] : memref<64x32xbf16, #tpu.memory_space<vmem>>, vector<64x32xbf16>
    %cst_36 = arith.constant dense<0.000000e+00> : vector<16x32xf32>
    %139 = tpu.matmul %137, %138, %cst_36 {dimension_numbers = #tpu.dot_dimension_numbers<[1], [0], [0], [1], [0, 0, 1, 1], [], []>} : vector<16x64xbf16>, vector<64x32xbf16>, vector<16x32xf32> -> vector<16x32xf32>
    %140 = vector.broadcast %8 : vector<1x32xf32> to vector<16x32xf32>
    %141 = arith.addf %139, %140 : vector<16x32xf32>
    %142 = arith.addf %141, %129 : vector<16x32xf32>
    %cst_37 = arith.constant dense<0.000000e+00> : vector<16xf32>
    %143 = vector.multi_reduction <add>, %142, %cst_37 [1] : vector<16x32xf32> to vector<16xf32>
    %144 = vector.shape_cast %143 : vector<16xf32> to vector<16x1xf32>
    %cst_38 = arith.constant 3.200000e+01 : f32
    %145 = vector.broadcast %cst_38 : f32 to vector<16x1xf32>
    %146 = arith.divf %144, %145 : vector<16x1xf32>
    %147 = vector.broadcast %146 : vector<16x1xf32> to vector<16x32xf32>
    %148 = arith.subf %142, %147 : vector<16x32xf32>
    %149 = vector.broadcast %146 : vector<16x1xf32> to vector<16x32xf32>
    %150 = arith.subf %142, %149 : vector<16x32xf32>
    %151 = arith.mulf %148, %150 : vector<16x32xf32>
    %cst_39 = arith.constant dense<0.000000e+00> : vector<16xf32>
    %152 = vector.multi_reduction <add>, %151, %cst_39 [1] : vector<16x32xf32> to vector<16xf32>
    %153 = vector.shape_cast %152 : vector<16xf32> to vector<16x1xf32>
    %cst_40 = arith.constant 3.200000e+01 : f32
    %154 = vector.broadcast %cst_40 : f32 to vector<16x1xf32>
    %155 = arith.divf %153, %154 : vector<16x1xf32>
    %156 = vector.broadcast %146 : vector<16x1xf32> to vector<16x32xf32>
    %157 = arith.subf %142, %156 : vector<16x32xf32>
    %cst_41 = arith.constant 9.99999974E-6 : f32
    %158 = vector.broadcast %cst_41 : f32 to vector<16x1xf32>
    %159 = arith.addf %155, %158 : vector<16x1xf32>
    %160 = math.rsqrt %159 : vector<16x1xf32>
    %161 = vector.broadcast %160 : vector<16x1xf32> to vector<16x32xf32>
    %162 = arith.mulf %157, %161 : vector<16x32xf32>
    %163 = vector.broadcast %9 : vector<1x32xf32> to vector<16x32xf32>
    %164 = arith.mulf %162, %163 : vector<16x32xf32>
    %165 = vector.broadcast %10 : vector<1x32xf32> to vector<16x32xf32>
    %166 = arith.addf %164, %165 : vector<16x32xf32>
    %167 = vector.shape_cast %166 : vector<16x32xf32> to vector<2x8x32xf32>
    %c0_42 = arith.constant 0 : index
    %c0_43 = arith.constant 0 : index
    %c0_44 = arith.constant 0 : index
    %168 = vector.load %arg7[%c0_42, %c0_43, %c0_44] : memref<2x8x32xf32, #tpu.memory_space<vmem>>, vector<2x8x32xf32>
    tpu.vector_store %arg7[%c0_42, %c0_43, %c0_44], %167 {strides = array<i32>} : memref<2x8x32xf32, #tpu.memory_space<vmem>>, vector<2x8x32xf32>,
    return
  }
  func.func @transform_0(%arg0: i32) -> (i32, i32, i32) {
    %c0_i32 = arith.constant 0 : i32
    %c0_i32_0 = arith.constant 0 : i32
    %c0_i32_1 = arith.constant 0 : i32
    return %arg0, %c0_i32, %c0_i32_0 : i32, i32, i32
  }
  func.func @transform_1(%arg0: i32) -> (i32, i32) {
    %c0_i32 = arith.constant 0 : i32
    %c0_i32_0 = arith.constant 0 : i32
    %c0_i32_1 = arith.constant 0 : i32
    return %c0_i32, %c0_i32_0 : i32, i32
  }
  func.func @transform_2(%arg0: i32) -> (i32, i32) {
    %c0_i32 = arith.constant 0 : i32
    %c0_i32_0 = arith.constant 0 : i32
    %c0_i32_1 = arith.constant 0 : i32
    return %c0_i32, %c0_i32_0 : i32, i32
  }
  func.func @transform_3(%arg0: i32) -> (i32, i32) {
    %c0_i32 = arith.constant 0 : i32
    %c0_i32_0 = arith.constant 0 : i32
    %c0_i32_1 = arith.constant 0 : i32
    return %c0_i32, %c0_i32_0 : i32, i32
  }
  func.func @transform_4(%arg0: i32) -> (i32, i32) {
    %c0_i32 = arith.constant 0 : i32
    %c0_i32_0 = arith.constant 0 : i32
    %c0_i32_1 = arith.constant 0 : i32
    return %c0_i32, %c0_i32_0 : i32, i32
  }
  func.func @transform_5(%arg0: i32) -> (i32, i32) {
    %c0_i32 = arith.constant 0 : i32
    %c0_i32_0 = arith.constant 0 : i32
    %c0_i32_1 = arith.constant 0 : i32
    return %c0_i32, %c0_i32_0 : i32, i32
  }
  func.func @transform_6(%arg0: i32) -> (i32, i32, i32) {
    %c0_i32 = arith.constant 0 : i32
    %c0_i32_0 = arith.constant 0 : i32
    %c0_i32_1 = arith.constant 0 : i32
    return %arg0, %c0_i32, %c0_i32_0 : i32, i32, i32
  }
}

</mosaic_0001>

<llo_original>
// kernel: tpu_custom_call.1
$region0: #{tpu_custom_call.1}
  #allocation0 [shape = 'u32[]', space=smem, size = 0x4, offset = 0x4, fixed_abs, tag = 'smem constant byte address 0x4 - core index']
  #allocation1 [shape = 'u32[144,128]{1,0:T(1,128)}', space=vmem, size = 0x12000, scoped, tag = 'internal scratch']
  %s0 = inlined_call_operand.vmem [shape: f32[2,8,32], index: 0, kind: input, shape index: {}]
  %s1 = inlined_call_operand.vmem [shape: bf16[32,384], index: 1, kind: input, shape index: {}]
  %s2 = inlined_call_operand.vmem [shape: bf16[128,32], index: 2, kind: input, shape index: {}]
  %s3 = inlined_call_operand.vmem [shape: bf16[32,64], index: 3, kind: input, shape index: {}]
  %s4 = inlined_call_operand.vmem [shape: bf16[64,32], index: 4, kind: input, shape index: {}]
  %s5 = inlined_call_operand.vmem [shape: f32[8,128], index: 5, kind: input, shape index: {}]
  %s6 = inlined_call_operand.hbm [shape: f32[2,8,32], index: 6, kind: output, shape index: {}]
  %s7 = sld [smem:[#allocation0]]
  $region34: #{tpu_custom_call.1} parent=0
    _
  %s9 = ssub.s32 1, %s7
  %s10 = scalar_select 0, %s9, %s7
  $region1: #{tpu_custom_call.1} parent=0
    #allocation2 [shape = 'u8[8192]{0}', space=vmem, size = 0x2000, scoped, tag = 'output window, operand 0, single buffered']
    #allocation3 [shape = 's32[1]{0}', space=sflag, size = 0x4, scoped, tag = 'scoped memory for tpu_custom_call.1']
    %11 = vsyncpa [#allocation3], 0
    // Predicated region
    $region2: #{tpu_custom_call.1} parent=1 // pred_check
      _
    $region3: #{tpu_custom_call.1} parent=1 // pred_check_branch
      %13 = sbr.rel (0) target = $region5
    $region4: #{tpu_custom_call.1} parent=1 // pred_region
      _
    $region5: #{tpu_custom_call.1} parent=1 // pred_fallthru
      _
    // Predicated region
    $region6: #{tpu_custom_call.1} parent=1 // pred_check
      _
    $region7: #{tpu_custom_call.1} parent=1 // pred_check_branch
      %15 = sbr.rel (0) target = $region9
    $region8: #{tpu_custom_call.1} parent=1 // pred_region
      _
    $region9: #{tpu_custom_call.1} parent=1 // pred_fallthru
      _
    // Predicated region
    $region10: #{tpu_custom_call.1} parent=1 // pred_check
      _
    $region11: #{tpu_custom_call.1} parent=1 // pred_check_branch
      %17 = sbr.rel (0) target = $region13
    $region12: #{tpu_custom_call.1} parent=1 // pred_region
      _
    $region13: #{tpu_custom_call.1} parent=1 // pred_fallthru
      _
    // Predicated region
    $region14: #{tpu_custom_call.1} parent=1 // pred_check
      _
    $region15: #{tpu_custom_call.1} parent=1 // pred_check_branch
      %19 = sbr.rel (0) target = $region17
    $region16: #{tpu_custom_call.1} parent=1 // pred_region
      _
    $region17: #{tpu_custom_call.1} parent=1 // pred_fallthru
      _
    // Predicated region
    $region18: #{tpu_custom_call.1} parent=1 // pred_check
      _
    $region19: #{tpu_custom_call.1} parent=1 // pred_check_branch
      %21 = sbr.rel (0) target = $region21
    $region20: #{tpu_custom_call.1} parent=1 // pred_region
      _
    $region21: #{tpu_custom_call.1} parent=1 // pred_fallthru
      _
    // Predicated region
    $region22: #{tpu_custom_call.1} parent=1 // pred_check
      _
    $region23: #{tpu_custom_call.1} parent=1 // pred_check_branch
      %23 = sbr.rel (0) target = $region25
    $region24: #{tpu_custom_call.1} parent=1 // pred_region
      _
    $region25: #{tpu_custom_call.1} parent=1 // pred_fallthru
      _
    %v25 = vld [vmem:[%s0] sm:$0xff]
    %v26 = vld [vmem:[%s0 + $0x8] sm:$0xff]
    %v27 = vpack.c.bf16 %v26, %v25
    %v28 = vld [vmem:[%s5] sm:$0xff]
    %v29 = vld [vmem:[%s1] sm:$0xff]
    %v30 = vld [vmem:[%s1 + $0x8] sm:$0xf]
    %v31 = vld [vmem:[%s1 + $0xc] sm:$0xff]
    %v32 = vld [vmem:[%s1 + $0x14] sm:$0xf]
    %v33 = vld [vmem:[%s1 + $0x18] sm:$0xff]
    %v34 = vld [vmem:[%s1 + $0x20] sm:$0xf]
    %v35 = vld [vmem:[%s1 + $0x24] sm:$0xff]
    %v36 = vld [vmem:[%s1 + $0x2c] sm:$0xf]
    %v45 = vunpack.c.l.b16 %v29
    %v46 = vunpack.c.h.b16 %v29
    %v47 = vunpack.c.l.b16 %v30
    %v48 = vunpack.c.l.b16 %v31
    %v49 = vunpack.c.h.b16 %v31
    %v50 = vunpack.c.l.b16 %v32
    %v51 = vunpack.c.l.b16 %v33
    %v52 = vunpack.c.h.b16 %v33
    %v53 = vunpack.c.l.b16 %v34
    %v54 = vunpack.c.l.b16 %v35
    %v55 = vunpack.c.h.b16 %v35
    %v56 = vunpack.c.l.b16 %v36
    %v57 = vpack.c.b16 %v48, %v45
    %v58 = vpack.c.b16 %v49, %v46
    %v59 = vpack.c.b16 %v50, %v47
    %v60 = vpack.c.b16 %v54, %v51
    %v61 = vpack.c.b16 %v55, %v52
    %v62 = vpack.c.b16 %v56, %v53
    %vm69 = vcmask 261120
    %v71 = vsel %vm69, %v27, 0
    %73 = vmatprep.subr.bf16.mxu0 %v58
    %74 = vmatpush1.bf16.msra.mxu0 %v57
    %75 = vmatprep.subr.bf16.mxu0 %v61
    %76 = vmatpush1.bf16.msra.mxu0 %v60
    %77 = vmatprep.subr.bf16.mxu0 0
    %78 = vmatpush1.bf16.msra.mxu0 0
    %79 = vmatprep.subr.bf16.mxu0 0
    %80 = vmatpush1.bf16.msra.mxu0 0
    %81 = vmatprep.subr.bf16.mxu0 0
    %82 = vmatpush1.bf16.msra.mxu0 0
    %83 = vmatprep.subr.bf16.mxu0 0
    %84 = vmatpush1.bf16.msra.mxu0 0
    %85 = vmatprep.subr.bf16.mxu0 0
    %86 = vmatpush1.bf16.msra.mxu0 0
    %87 = vmatprep.subr.bf16.mxu0 0
    %88 = vmatpush1.bf16.msra.mxu0 0
    %89 = vmatprep.subr.bf16.mxu0 0
    %90 = vmatpush1.bf16.msra.mxu0 0
    %91 = vmatprep.subr.bf16.mxu0 0
    %92 = vmatpush1.bf16.msra.mxu0 0
    %93 = vmatprep.subr.bf16.mxu0 0
    %94 = vmatpush1.bf16.msra.mxu0 0
    %95 = vmatprep.subr.bf16.mxu0 0
    %96 = vmatpush1.bf16.msra.mxu0 0
    %97 = vmatprep.subr.bf16.mxu0 0
    %98 = vmatpush1.bf16.msra.mxu0 0
    %99 = vmatprep.subr.bf16.mxu0 0
    %100 = vmatpush1.bf16.msra.mxu0 0
    %101 = vmatprep.subr.bf16.mxu0 0
    %102 = vmatpush1.bf16.msra.mxu0 0
    %103 = vmatprep.subr.bf16.mxu0 0
    %104 = vmatpush1.bf16.msra.mxu0 0
    %105 = vmatprep.mubr.bf16.mxu0 0
    %106 = vmatmul.mubr.bf16.gmra.mrb[0].mxu0 %v71
    %v107 = vpop.f32.mrb[0].mxu0
    %v108 = vadd.f32 0.0, %v107
    %v109 = vpop.f32.mrb[0].mxu0
    %v110 = vadd.f32 0.0, %v109
    %v111 = vpop.f32.mrb[0].mxu0
    %v112 = vadd.f32 0.0, %v111
    %v113 = vpop.f32.mrb[0].mxu0
    %v114 = vadd.f32 0.0, %v113
    %115 = vdwg.mxu0
    %116 = vmatprep.subr.bf16.mxu0 0
    %117 = vmatpush1.bf16.msra.mxu0 %v59
    %118 = vmatprep.subr.bf16.mxu0 0
    %119 = vmatpush1.bf16.msra.mxu0 %v62
    %120 = vmatprep.subr.bf16.mxu0 0
    %121 = vmatpush1.bf16.msra.mxu0 0
    %122 = vmatprep.subr.bf16.mxu0 0
    %123 = vmatpush1.bf16.msra.mxu0 0
    %124 = vmatprep.subr.bf16.mxu0 0
    %125 = vmatpush1.bf16.msra.mxu0 0
    %126 = vmatprep.subr.bf16.mxu0 0
    %127 = vmatpush1.bf16.msra.mxu0 0
    %128 = vmatprep.subr.bf16.mxu0 0
    %129 = vmatpush1.bf16.msra.mxu0 0
    %130 = vmatprep.subr.bf16.mxu0 0
    %131 = vmatpush1.bf16.msra.mxu0 0
    %132 = vmatprep.subr.bf16.mxu0 0
    %133 = vmatpush1.bf16.msra.mxu0 0
    %134 = vmatprep.subr.bf16.mxu0 0
    %135 = vmatpush1.bf16.msra.mxu0 0
    %136 = vmatprep.subr.bf16.mxu0 0
    %137 = vmatpush1.bf16.msra.mxu0 0
    %138 = vmatprep.subr.bf16.mxu0 0
    %139 = vmatpush1.bf16.msra.mxu0 0
    %140 = vmatprep.subr.bf16.mxu0 0
    %141 = vmatpush1.bf16.msra.mxu0 0
    %142 = vmatprep.subr.bf16.mxu0 0
    %143 = vmatpush1.bf16.msra.mxu0 0
    %144 = vmatprep.subr.bf16.mxu0 0
    %145 = vmatpush1.bf16.msra.mxu0 0
    %146 = vmatprep.subr.bf16.mxu0 0
    %147 = vmatpush1.bf16.msra.mxu0 0
    %148 = vmatprep.mubr.bf16.mxu0 0
    %149 = vmatmul.mubr.bf16.gmra.mrb[0].mxu0 %v71
    %v150 = vpop.f32.mrb[0].mxu0
    %v151 = vadd.f32 0.0, %v150
    %v152 = vpop.f32.mrb[0].mxu0
    %v153 = vpop.f32.mrb[0].mxu0
    %v154 = vadd.f32 0.0, %v153
    %v155 = vpop.f32.mrb[0].mxu0
    %156 = vdwg.mxu0
    %v157 = vpack.c.bf16 %v112, %v108
    %v158 = vpack.c.bf16 %v114, %v110
    %v159 = vpack.c.bf16 %v154, %v151
    %v161 = vunpack.c.l.b16 %v157
    %v162 = vunpack.c.h.b16 %v157
    %v163 = vpack.c.b16 %v161, %v161
    %v164 = vpack.c.b16 %v162, %v162
    %v166 = vunpack.c.l.b16 %v158
    %v167 = vunpack.c.h.b16 %v158
    %v168 = vpack.c.b16 %v166, %v166
    %v169 = vpack.c.b16 %v167, %v167
    %v171 = vunpack.c.l.b16 %v159
    %v172 = vunpack.c.h.b16 %v159
    %v173 = vpack.c.b16 %v171, %v171
    %v174 = vpack.c.b16 %v172, %v172
    %v176 = vsel %vm69, %v163, 0
    %v179 = vsel %vm69, %v168, 0
    %181 = vmatprep.subr.bf16.mxu0 0
    %182 = vmatpush1.bf16.xpose.msra.mxu0 %v179
    %183 = vmatprep.subr.bf16.mxu0 0
    %184 = vmatpush1.bf16.xpose.msra.mxu0 0
    %185 = vmatprep.subr.bf16.mxu0 0
    %186 = vmatpush1.bf16.xpose.msra.mxu0 0
    %187 = vmatprep.subr.bf16.mxu0 0
    %188 = vmatpush1.bf16.xpose.msra.mxu0 0
    %189 = vmatprep.subr.bf16.mxu0 0
    %190 = vmatpush1.bf16.xpose.msra.mxu0 0
    %191 = vmatprep.subr.bf16.mxu0 0
    %192 = vmatpush1.bf16.xpose.msra.mxu0 0
    %193 = vmatprep.subr.bf16.mxu0 0
    %194 = vmatpush1.bf16.xpose.msra.mxu0 0
    %195 = vmatprep.subr.bf16.mxu0 0
    %196 = vmatpush1.bf16.xpose.msra.mxu0 0
    %197 = vmatprep.subr.bf16.mxu0 0
    %198 = vmatpush1.bf16.xpose.msra.mxu0 0
    %199 = vmatprep.subr.bf16.mxu0 0
    %200 = vmatpush1.bf16.xpose.msra.mxu0 0
    %201 = vmatprep.subr.bf16.mxu0 0
    %202 = vmatpush1.bf16.xpose.msra.mxu0 0
    %203 = vmatprep.subr.bf16.mxu0 0
    %204 = vmatpush1.bf16.xpose.msra.mxu0 0
    %205 = vmatprep.subr.bf16.mxu0 0
    %206 = vmatpush1.bf16.xpose.msra.mxu0 0
    %207 = vmatprep.subr.bf16.mxu0 0
    %208 = vmatpush1.bf16.xpose.msra.mxu0 0
    %209 = vmatprep.subr.bf16.mxu0 0
    %210 = vmatpush1.bf16.xpose.msra.mxu0 0
    %211 = vmatprep.subr.bf16.mxu0 0
    %212 = vmatpush1.bf16.xpose.msra.mxu0 0
    %213 = vmatprep.mubr.bf16.mxu0 0
    %214 = vmatmul.mubr.bf16.gmra.mrb[0].mxu0 %v176
    %v215 = vpop.f32.mrb[0].mxu0
    %v216 = vadd.f32 0.0, %v215
    %v217 = vpop.f32.mrb[0].mxu0
    %v218 = vpop.f32.mrb[0].mxu0
    %v219 = vpop.f32.mrb[0].mxu0
    %220 = vdwg.mxu0
    %v222 = vsel %vm69, %v164, 0
    %v225 = vsel %vm69, %v169, 0
    %227 = vmatprep.subr.bf16.mxu0 0
    %228 = vmatpush1.bf16.xpose.msra.mxu0 %v225
    %229 = vmatprep.subr.bf16.mxu0 0
    %230 = vmatpush1.bf16.xpose.msra.mxu0 0
    %231 = vmatprep.subr.bf16.mxu0 0
    %232 = vmatpush1.bf16.xpose.msra.mxu0 0
    %233 = vmatprep.subr.bf16.mxu0 0
    %234 = vmatpush1.bf16.xpose.msra.mxu0 0
    %235 = vmatprep.subr.bf16.mxu0 0
    %236 = vmatpush1.bf16.xpose.msra.mxu0 0
    %237 = vmatprep.subr.bf16.mxu0 0
    %238 = vmatpush1.bf16.xpose.msra.mxu0 0
    %239 = vmatprep.subr.bf16.mxu0 0
    %240 = vmatpush1.bf16.xpose.msra.mxu0 0
    %241 = vmatprep.subr.bf16.mxu0 0
    %242 = vmatpush1.bf16.xpose.msra.mxu0 0
    %243 = vmatprep.subr.bf16.mxu0 0
    %244 = vmatpush1.bf16.xpose.msra.mxu0 0
    %245 = vmatprep.subr.bf16.mxu0 0
    %246 = vmatpush1.bf16.xpose.msra.mxu0 0
    %247 = vmatprep.subr.bf16.mxu0 0
    %248 = vmatpush1.bf16.xpose.msra.mxu0 0
    %249 = vmatprep.subr.bf16.mxu0 0
    %250 = vmatpush1.bf16.xpose.msra.mxu0 0
    %251 = vmatprep.subr.bf16.mxu0 0
    %252 = vmatpush1.bf16.xpose.msra.mxu0 0
    %253 = vmatprep.subr.bf16.mxu0 0
    %254 = vmatpush1.bf16.xpose.msra.mxu0 0
    %255 = vmatprep.subr.bf16.mxu0 0
    %256 = vmatpush1.bf16.xpose.msra.mxu0 0
    %257 = vmatprep.subr.bf16.mxu0 0
    %258 = vmatpush1.bf16.xpose.msra.mxu0 0
    %259 = vmatprep.mubr.bf16.mxu0 0
    %260 = vmatmul.mubr.bf16.gmra.mrb[0].mxu0 %v222
    %v261 = vpop.f32.mrb[0].mxu0
    %v262 = vadd.f32 0.0, %v261
    %v263 = vpop.f32.mrb[0].mxu0
    %v264 = vpop.f32.mrb[0].mxu0
    %v265 = vpop.f32.mrb[0].mxu0
    %266 = vdwg.mxu0
    %vm267 = vcmask 64512
    %v268 = vsel %vm267, %v216, -inf
    %269 = vmax.xlane.f32.xlu0 %v268
    %v270 = vpop.xlane.xlu0 %269
    %v271 = vsel %vm267, %v262, -inf
    %272 = vmax.xlane.f32.xlu0 %v271
    %v273 = vpop.xlane.xlu0 %272
    %v274 = vsub.f32 %v216, %v270
    %v275 = vsub.f32 %v262, %v273
    %v276 = vmul.f32 %v274, 1.442695
    %v277 = vpow.pop %v276
    %v278 = vmul.f32 %v275, 1.442695
    %v279 = vpow.pop %v278
    %v280 = vsel %vm267, %v277, 0.0
    %281 = vadd.xlane.f32.xlu0 %v280
    %v282 = vpop.xlane.xlu0 %281
    %v283 = vsel %vm267, %v279, 0.0
    %284 = vadd.xlane.f32.xlu0 %v283
    %v285 = vpop.xlane.xlu0 %284
    %v286 = vrcp.pop %v282
    %v287 = vrcp.pop %v285
    %v288 = vmul.f32 %v277, %v286
    %v289 = vmul.f32 %v279, %v287
    %v290 = vpack.c.bf16 %v288, %v288
    %v291 = vpack.c.bf16 %v289, %v289
    %v293 = vsel %vm267, %v290, 0
    %vm295 = vcmask 1043456
    %v297 = vsel %vm295, %v173, 0
    %299 = vmatprep.subr.bf16.mxu0 0
    %300 = vmatpush1.bf16.msra.mxu0 %v297
    %301 = vmatprep.subr.bf16.mxu0 0
    %302 = vmatpush1.bf16.msra.mxu0 0
    %303 = vmatprep.subr.bf16.mxu0 0
    %304 = vmatpush1.bf16.msra.mxu0 0
    %305 = vmatprep.subr.bf16.mxu0 0
    %306 = vmatpush1.bf16.msra.mxu0 0
    %307 = vmatprep.subr.bf16.mxu0 0
    %308 = vmatpush1.bf16.msra.mxu0 0
    %309 = vmatprep.subr.bf16.mxu0 0
    %310 = vmatpush1.bf16.msra.mxu0 0
    %311 = vmatprep.subr.bf16.mxu0 0
    %312 = vmatpush1.bf16.msra.mxu0 0
    %313 = vmatprep.subr.bf16.mxu0 0
    %314 = vmatpush1.bf16.msra.mxu0 0
    %315 = vmatprep.subr.bf16.mxu0 0
    %316 = vmatpush1.bf16.msra.mxu0 0
    %317 = vmatprep.subr.bf16.mxu0 0
    %318 = vmatpush1.bf16.msra.mxu0 0
    %319 = vmatprep.subr.bf16.mxu0 0
    %320 = vmatpush1.bf16.msra.mxu0 0
    %321 = vmatprep.subr.bf16.mxu0 0
    %322 = vmatpush1.bf16.msra.mxu0 0
    %323 = vmatprep.subr.bf16.mxu0 0
    %324 = vmatpush1.bf16.msra.mxu0 0
    %325 = vmatprep.subr.bf16.mxu0 0
    %326 = vmatpush1.bf16.msra.mxu0 0
    %327 = vmatprep.subr.bf16.mxu0 0
    %328 = vmatpush1.bf16.msra.mxu0 0
    %329 = vmatprep.subr.bf16.mxu0 0
    %330 = vmatpush1.bf16.msra.mxu0 0
    %331 = vmatprep.mubr.bf16.mxu0 0
    %332 = vmatmul.mubr.bf16.gmra.mrb[0].mxu0 %v293
    %v333 = vpop.f32.mrb[0].mxu0
    %v334 = vadd.f32 0.0, %v333
    %v335 = vpop.f32.mrb[0].mxu0
    %v336 = vpop.f32.mrb[0].mxu0
    %v337 = vpop.f32.mrb[0].mxu0
    %338 = vdwg.mxu0
    %v340 = vsel %vm267, %v291, 0
    %v343 = vsel %vm295, %v174, 0
    %345 = vmatprep.subr.bf16.mxu0 0
    %346 = vmatpush1.bf16.msra.mxu0 %v343
    %347 = vmatprep.subr.bf16.mxu0 0
    %348 = vmatpush1.bf16.msra.mxu0 0
    %349 = vmatprep.subr.bf16.mxu0 0
    %350 = vmatpush1.bf16.msra.mxu0 0
    %351 = vmatprep.subr.bf16.mxu0 0
    %352 = vmatpush1.bf16.msra.mxu0 0
    %353 = vmatprep.subr.bf16.mxu0 0
    %354 = vmatpush1.bf16.msra.mxu0 0
    %355 = vmatprep.subr.bf16.mxu0 0
    %356 = vmatpush1.bf16.msra.mxu0 0
    %357 = vmatprep.subr.bf16.mxu0 0
    %358 = vmatpush1.bf16.msra.mxu0 0
    %359 = vmatprep.subr.bf16.mxu0 0
    %360 = vmatpush1.bf16.msra.mxu0 0
    %361 = vmatprep.subr.bf16.mxu0 0
    %362 = vmatpush1.bf16.msra.mxu0 0
    %363 = vmatprep.subr.bf16.mxu0 0
    %364 = vmatpush1.bf16.msra.mxu0 0
    %365 = vmatprep.subr.bf16.mxu0 0
    %366 = vmatpush1.bf16.msra.mxu0 0
    %367 = vmatprep.subr.bf16.mxu0 0
    %368 = vmatpush1.bf16.msra.mxu0 0
    %369 = vmatprep.subr.bf16.mxu0 0
    %370 = vmatpush1.bf16.msra.mxu0 0
    %371 = vmatprep.subr.bf16.mxu0 0
    %372 = vmatpush1.bf16.msra.mxu0 0
    %373 = vmatprep.subr.bf16.mxu0 0
    %374 = vmatpush1.bf16.msra.mxu0 0
    %375 = vmatprep.subr.bf16.mxu0 0
    %376 = vmatpush1.bf16.msra.mxu0 0
    %377 = vmatprep.mubr.bf16.mxu0 0
    %378 = vmatmul.mubr.bf16.gmra.mrb[0].mxu0 %v340
    %v379 = vpop.f32.mrb[0].mxu0
    %v380 = vadd.f32 0.0, %v379
    %v381 = vpop.f32.mrb[0].mxu0
    %v382 = vpop.f32.mrb[0].mxu0
    %v383 = vpop.f32.mrb[0].mxu0
    %384 = vdwg.mxu0
    %385 = vrot.lane.b32.xlu0 %v163, 96
    %v386 = vpop.permute.xlu0 %385
    %387 = vrot.lane.b32.xlu0 %v168, 96
    %v388 = vpop.permute.xlu0 %387
    %v390 = vsel %vm69, %v386, 0
    %v393 = vsel %vm69, %v388, 0
    %395 = vmatprep.subr.bf16.mxu0 0
    %396 = vmatpush1.bf16.xpose.msra.mxu0 %v393
    %397 = vmatprep.subr.bf16.mxu0 0
    %398 = vmatpush1.bf16.xpose.msra.mxu0 0
    %399 = vmatprep.subr.bf16.mxu0 0
    %400 = vmatpush1.bf16.xpose.msra.mxu0 0
    %401 = vmatprep.subr.bf16.mxu0 0
    %402 = vmatpush1.bf16.xpose.msra.mxu0 0
    %403 = vmatprep.subr.bf16.mxu0 0
    %404 = vmatpush1.bf16.xpose.msra.mxu0 0
    %405 = vmatprep.subr.bf16.mxu0 0
    %406 = vmatpush1.bf16.xpose.msra.mxu0 0
    %407 = vmatprep.subr.bf16.mxu0 0
    %408 = vmatpush1.bf16.xpose.msra.mxu0 0
    %409 = vmatprep.subr.bf16.mxu0 0
    %410 = vmatpush1.bf16.xpose.msra.mxu0 0
    %411 = vmatprep.subr.bf16.mxu0 0
    %412 = vmatpush1.bf16.xpose.msra.mxu0 0
    %413 = vmatprep.subr.bf16.mxu0 0
    %414 = vmatpush1.bf16.xpose.msra.mxu0 0
    %415 = vmatprep.subr.bf16.mxu0 0
    %416 = vmatpush1.bf16.xpose.msra.mxu0 0
    %417 = vmatprep.subr.bf16.mxu0 0
    %418 = vmatpush1.bf16.xpose.msra.mxu0 0
    %419 = vmatprep.subr.bf16.mxu0 0
    %420 = vmatpush1.bf16.xpose.msra.mxu0 0
    %421 = vmatprep.subr.bf16.mxu0 0
    %422 = vmatpush1.bf16.xpose.msra.mxu0 0
    %423 = vmatprep.subr.bf16.mxu0 0
    %424 = vmatpush1.bf16.xpose.msra.mxu0 0
    %425 = vmatprep.subr.bf16.mxu0 0
    %426 = vmatpush1.bf16.xpose.msra.mxu0 0
    %427 = vmatprep.mubr.bf16.mxu0 0
    %428 = vmatmul.mubr.bf16.gmra.mrb[0].mxu0 %v390
    %v429 = vpop.f32.mrb[0].mxu0
    %v430 = vadd.f32 0.0, %v429
    %v431 = vpop.f32.mrb[0].mxu0
    %v432 = vpop.f32.mrb[0].mxu0
    %v433 = vpop.f32.mrb[0].mxu0
    %434 = vdwg.mxu0
    %435 = vrot.lane.b32.xlu0 %v164, 96
    %v436 = vpop.permute.xlu0 %435
    %437 = vrot.lane.b32.xlu0 %v169, 96
    %v438 = vpop.permute.xlu0 %437
    %v440 = vsel %vm69, %v436, 0
    %v443 = vsel %vm69, %v438, 0
    %445 = vmatprep.subr.bf16.mxu0 0
    %446 = vmatpush1.bf16.xpose.msra.mxu0 %v443
    %447 = vmatprep.subr.bf16.mxu0 0
    %448 = vmatpush1.bf16.xpose.msra.mxu0 0
    %449 = vmatprep.subr.bf16.mxu0 0
    %450 = vmatpush1.bf16.xpose.msra.mxu0 0
    %451 = vmatprep.subr.bf16.mxu0 0
    %452 = vmatpush1.bf16.xpose.msra.mxu0 0
    %453 = vmatprep.subr.bf16.mxu0 0
    %454 = vmatpush1.bf16.xpose.msra.mxu0 0
    %455 = vmatprep.subr.bf16.mxu0 0
    %456 = vmatpush1.bf16.xpose.msra.mxu0 0
    %457 = vmatprep.subr.bf16.mxu0 0
    %458 = vmatpush1.bf16.xpose.msra.mxu0 0
    %459 = vmatprep.subr.bf16.mxu0 0
    %460 = vmatpush1.bf16.xpose.msra.mxu0 0
    %461 = vmatprep.subr.bf16.mxu0 0
    %462 = vmatpush1.bf16.xpose.msra.mxu0 0
    %463 = vmatprep.subr.bf16.mxu0 0
    %464 = vmatpush1.bf16.xpose.msra.mxu0 0
    %465 = vmatprep.subr.bf16.mxu0 0
    %466 = vmatpush1.bf16.xpose.msra.mxu0 0
    %467 = vmatprep.subr.bf16.mxu0 0
    %468 = vmatpush1.bf16.xpose.msra.mxu0 0
    %469 = vmatprep.subr.bf16.mxu0 0
    %470 = vmatpush1.bf16.xpose.msra.mxu0 0
    %471 = vmatprep.subr.bf16.mxu0 0
    %472 = vmatpush1.bf16.xpose.msra.mxu0 0
    %473 = vmatprep.subr.bf16.mxu0 0
    %474 = vmatpush1.bf16.xpose.msra.mxu0 0
    %475 = vmatprep.subr.bf16.mxu0 0
    %476 = vmatpush1.bf16.xpose.msra.mxu0 0
    %477 = vmatprep.mubr.bf16.mxu0 0
    %478 = vmatmul.mubr.bf16.gmra.mrb[0].mxu0 %v440
    %v479 = vpop.f32.mrb[0].mxu0
    %v480 = vadd.f32 0.0, %v479
    %v481 = vpop.f32.mrb[0].mxu0
    %v482 = vpop.f32.mrb[0].mxu0
    %v483 = vpop.f32.mrb[0].mxu0
    %484 = vdwg.mxu0
    %v485 = vsel %vm267, %v430, -inf
    %486 = vmax.xlane.f32.xlu0 %v485
    %v487 = vpop.xlane.xlu0 %486
    %v488 = vsel %vm267, %v480, -inf
    %489 = vmax.xlane.f32.xlu0 %v488
    %v490 = vpop.xlane.xlu0 %489
    %v491 = vsub.f32 %v430, %v487
    %v492 = vsub.f32 %v480, %v490
    %v493 = vmul.f32 %v491, 1.442695
    %v494 = vpow.pop %v493
    %v495 = vmul.f32 %v492, 1.442695
    %v496 = vpow.pop %v495
    %v497 = vsel %vm267, %v494, 0.0
    %498 = vadd.xlane.f32.xlu0 %v497
    %v499 = vpop.xlane.xlu0 %498
    %v500 = vsel %vm267, %v496, 0.0
    %501 = vadd.xlane.f32.xlu0 %v500
    %v502 = vpop.xlane.xlu0 %501
    %v503 = vrcp.pop %v499
    %v504 = vrcp.pop %v502
    %v505 = vmul.f32 %v494, %v503
    %v506 = vmul.f32 %v496, %v504
    %v507 = vpack.c.bf16 %v505, %v505
    %v508 = vpack.c.bf16 %v506, %v506
    %509 = vrot.lane.b32.xlu0 %v173, 96
    %v510 = vpop.permute.xlu0 %509
    %v512 = vsel %vm267, %v507, 0
    %v515 = vsel %vm295, %v510, 0
    %517 = vmatprep.subr.bf16.mxu0 0
    %518 = vmatpush1.bf16.msra.mxu0 %v515
    %519 = vmatprep.subr.bf16.mxu0 0
    %520 = vmatpush1.bf16.msra.mxu0 0
    %521 = vmatprep.subr.bf16.mxu0 0
    %522 = vmatpush1.bf16.msra.mxu0 0
    %523 = vmatprep.subr.bf16.mxu0 0
    %524 = vmatpush1.bf16.msra.mxu0 0
    %525 = vmatprep.subr.bf16.mxu0 0
    %526 = vmatpush1.bf16.msra.mxu0 0
    %527 = vmatprep.subr.bf16.mxu0 0
    %528 = vmatpush1.bf16.msra.mxu0 0
    %529 = vmatprep.subr.bf16.mxu0 0
    %530 = vmatpush1.bf16.msra.mxu0 0
    %531 = vmatprep.subr.bf16.mxu0 0
    %532 = vmatpush1.bf16.msra.mxu0 0
    %533 = vmatprep.subr.bf16.mxu0 0
    %534 = vmatpush1.bf16.msra.mxu0 0
    %535 = vmatprep.subr.bf16.mxu0 0
    %536 = vmatpush1.bf16.msra.mxu0 0
    %537 = vmatprep.subr.bf16.mxu0 0
    %538 = vmatpush1.bf16.msra.mxu0 0
    %539 = vmatprep.subr.bf16.mxu0 0
    %540 = vmatpush1.bf16.msra.mxu0 0
    %541 = vmatprep.subr.bf16.mxu0 0
    %542 = vmatpush1.bf16.msra.mxu0 0
    %543 = vmatprep.subr.bf16.mxu0 0
    %544 = vmatpush1.bf16.msra.mxu0 0
    %545 = vmatprep.subr.bf16.mxu0 0
    %546 = vmatpush1.bf16.msra.mxu0 0
    %547 = vmatprep.subr.bf16.mxu0 0
    %548 = vmatpush1.bf16.msra.mxu0 0
    %549 = vmatprep.mubr.bf16.mxu0 0
    %550 = vmatmul.mubr.bf16.gmra.mrb[0].mxu0 %v512
    %v551 = vpop.f32.mrb[0].mxu0
    %v552 = vadd.f32 0.0, %v551
    %v553 = vpop.f32.mrb[0].mxu0
    %v554 = vpop.f32.mrb[0].mxu0
    %v555 = vpop.f32.mrb[0].mxu0
    %556 = vdwg.mxu0
    %557 = vrot.lane.b32.xlu0 %v174, 96
    %v558 = vpop.permute.xlu0 %557
    %v560 = vsel %vm267, %v508, 0
    %v563 = vsel %vm295, %v558, 0
    %565 = vmatprep.subr.bf16.mxu0 0
    %566 = vmatpush1.bf16.msra.mxu0 %v563
    %567 = vmatprep.subr.bf16.mxu0 0
    %568 = vmatpush1.bf16.msra.mxu0 0
    %569 = vmatprep.subr.bf16.mxu0 0
    %570 = vmatpush1.bf16.msra.mxu0 0
    %571 = vmatprep.subr.bf16.mxu0 0
    %572 = vmatpush1.bf16.msra.mxu0 0
    %573 = vmatprep.subr.bf16.mxu0 0
    %574 = vmatpush1.bf16.msra.mxu0 0
    %575 = vmatprep.subr.bf16.mxu0 0
    %576 = vmatpush1.bf16.msra.mxu0 0
    %577 = vmatprep.subr.bf16.mxu0 0
    %578 = vmatpush1.bf16.msra.mxu0 0
    %579 = vmatprep.subr.bf16.mxu0 0
    %580 = vmatpush1.bf16.msra.mxu0 0
    %581 = vmatprep.subr.bf16.mxu0 0
    %582 = vmatpush1.bf16.msra.mxu0 0
    %583 = vmatprep.subr.bf16.mxu0 0
    %584 = vmatpush1.bf16.msra.mxu0 0
    %585 = vmatprep.subr.bf16.mxu0 0
    %586 = vmatpush1.bf16.msra.mxu0 0
    %587 = vmatprep.subr.bf16.mxu0 0
    %588 = vmatpush1.bf16.msra.mxu0 0
    %589 = vmatprep.subr.bf16.mxu0 0
    %590 = vmatpush1.bf16.msra.mxu0 0
    %591 = vmatprep.subr.bf16.mxu0 0
    %592 = vmatpush1.bf16.msra.mxu0 0
    %593 = vmatprep.subr.bf16.mxu0 0
    %594 = vmatpush1.bf16.msra.mxu0 0
    %595 = vmatprep.subr.bf16.mxu0 0
    %596 = vmatpush1.bf16.msra.mxu0 0
    %597 = vmatprep.mubr.bf16.mxu0 0
    %598 = vmatmul.mubr.bf16.gmra.mrb[0].mxu0 %v560
    %v599 = vpop.f32.mrb[0].mxu0
    %v600 = vadd.f32 0.0, %v599
    %v601 = vpop.f32.mrb[0].mxu0
    %v602 = vpop.f32.mrb[0].mxu0
    %v603 = vpop.f32.mrb[0].mxu0
    %604 = vdwg.mxu0
    %605 = vrot.lane.b32.xlu0 %v163, 64
    %v606 = vpop.permute.xlu0 %605
    %607 = vrot.lane.b32.xlu0 %v168, 64
    %v608 = vpop.permute.xlu0 %607
    %v610 = vsel %vm69, %v606, 0
    %v613 = vsel %vm69, %v608, 0
    %615 = vmatprep.subr.bf16.mxu0 0
    %616 = vmatpush1.bf16.xpose.msra.mxu0 %v613
    %617 = vmatprep.subr.bf16.mxu0 0
    %618 = vmatpush1.bf16.xpose.msra.mxu0 0
    %619 = vmatprep.subr.bf16.mxu0 0
    %620 = vmatpush1.bf16.xpose.msra.mxu0 0
    %621 = vmatprep.subr.bf16.mxu0 0
    %622 = vmatpush1.bf16.xpose.msra.mxu0 0
    %623 = vmatprep.subr.bf16.mxu0 0
    %624 = vmatpush1.bf16.xpose.msra.mxu0 0
    %625 = vmatprep.subr.bf16.mxu0 0
    %626 = vmatpush1.bf16.xpose.msra.mxu0 0
    %627 = vmatprep.subr.bf16.mxu0 0
    %628 = vmatpush1.bf16.xpose.msra.mxu0 0
    %629 = vmatprep.subr.bf16.mxu0 0
    %630 = vmatpush1.bf16.xpose.msra.mxu0 0
    %631 = vmatprep.subr.bf16.mxu0 0
    %632 = vmatpush1.bf16.xpose.msra.mxu0 0
    %633 = vmatprep.subr.bf16.mxu0 0
    %634 = vmatpush1.bf16.xpose.msra.mxu0 0
    %635 = vmatprep.subr.bf16.mxu0 0
    %636 = vmatpush1.bf16.xpose.msra.mxu0 0
    %637 = vmatprep.subr.bf16.mxu0 0
    %638 = vmatpush1.bf16.xpose.msra.mxu0 0
    %639 = vmatprep.subr.bf16.mxu0 0
    %640 = vmatpush1.bf16.xpose.msra.mxu0 0
    %641 = vmatprep.subr.bf16.mxu0 0
    %642 = vmatpush1.bf16.xpose.msra.mxu0 0
    %643 = vmatprep.subr.bf16.mxu0 0
    %644 = vmatpush1.bf16.xpose.msra.mxu0 0
    %645 = vmatprep.subr.bf16.mxu0 0
    %646 = vmatpush1.bf16.xpose.msra.mxu0 0
    %647 = vmatprep.mubr.bf16.mxu0 0
    %648 = vmatmul.mubr.bf16.gmra.mrb[0].mxu0 %v610
    %v649 = vpop.f32.mrb[0].mxu0
    %v650 = vadd.f32 0.0, %v649
    %v651 = vpop.f32.mrb[0].mxu0
    %v652 = vpop.f32.mrb[0].mxu0
    %v653 = vpop.f32.mrb[0].mxu0
    %654 = vdwg.mxu0
    %655 = vrot.lane.b32.xlu0 %v164, 64
    %v656 = vpop.permute.xlu0 %655
    %657 = vrot.lane.b32.xlu0 %v169, 64
    %v658 = vpop.permute.xlu0 %657
    %v660 = vsel %vm69, %v656, 0
    %v663 = vsel %vm69, %v658, 0
    %665 = vmatprep.subr.bf16.mxu0 0
    %666 = vmatpush1.bf16.xpose.msra.mxu0 %v663
    %667 = vmatprep.subr.bf16.mxu0 0
    %668 = vmatpush1.bf16.xpose.msra.mxu0 0
    %669 = vmatprep.subr.bf16.mxu0 0
    %670 = vmatpush1.bf16.xpose.msra.mxu0 0
    %671 = vmatprep.subr.bf16.mxu0 0
    %672 = vmatpush1.bf16.xpose.msra.mxu0 0
    %673 = vmatprep.subr.bf16.mxu0 0
    %674 = vmatpush1.bf16.xpose.msra.mxu0 0
    %675 = vmatprep.subr.bf16.mxu0 0
    %676 = vmatpush1.bf16.xpose.msra.mxu0 0
    %677 = vmatprep.subr.bf16.mxu0 0
    %678 = vmatpush1.bf16.xpose.msra.mxu0 0
    %679 = vmatprep.subr.bf16.mxu0 0
    %680 = vmatpush1.bf16.xpose.msra.mxu0 0
    %681 = vmatprep.subr.bf16.mxu0 0
    %682 = vmatpush1.bf16.xpose.msra.mxu0 0
    %683 = vmatprep.subr.bf16.mxu0 0
    %684 = vmatpush1.bf16.xpose.msra.mxu0 0
    %685 = vmatprep.subr.bf16.mxu0 0
    %686 = vmatpush1.bf16.xpose.msra.mxu0 0
    %687 = vmatprep.subr.bf16.mxu0 0
    %688 = vmatpush1.bf16.xpose.msra.mxu0 0
    %689 = vmatprep.subr.bf16.mxu0 0
    %690 = vmatpush1.bf16.xpose.msra.mxu0 0
    %691 = vmatprep.subr.bf16.mxu0 0
    %692 = vmatpush1.bf16.xpose.msra.mxu0 0
    %693 = vmatprep.subr.bf16.mxu0 0
    %694 = vmatpush1.bf16.xpose.msra.mxu0 0
    %695 = vmatprep.subr.bf16.mxu0 0
    %696 = vmatpush1.bf16.xpose.msra.mxu0 0
    %697 = vmatprep.mubr.bf16.mxu0 0
    %698 = vmatmul.mubr.bf16.gmra.mrb[0].mxu0 %v660
    %v699 = vpop.f32.mrb[0].mxu0
    %v700 = vadd.f32 0.0, %v699
    %v701 = vpop.f32.mrb[0].mxu0
    %v702 = vpop.f32.mrb[0].mxu0
    %v703 = vpop.f32.mrb[0].mxu0
    %704 = vdwg.mxu0
    %v705 = vsel %vm267, %v650, -inf
    %706 = vmax.xlane.f32.xlu0 %v705
    %v707 = vpop.xlane.xlu0 %706
    %v708 = vsel %vm267, %v700, -inf
    %709 = vmax.xlane.f32.xlu0 %v708
    %v710 = vpop.xlane.xlu0 %709
    %v711 = vsub.f32 %v650, %v707
    %v712 = vsub.f32 %v700, %v710
    %v713 = vmul.f32 %v711, 1.442695
    %v714 = vpow.pop %v713
    %v715 = vmul.f32 %v712, 1.442695
    %v716 = vpow.pop %v715
    %v717 = vsel %vm267, %v714, 0.0
    %718 = vadd.xlane.f32.xlu0 %v717
    %v719 = vpop.xlane.xlu0 %718
    %v720 = vsel %vm267, %v716, 0.0
    %721 = vadd.xlane.f32.xlu0 %v720
    %v722 = vpop.xlane.xlu0 %721
    %v723 = vrcp.pop %v719
    %v724 = vrcp.pop %v722
    %v725 = vmul.f32 %v714, %v723
    %v726 = vmul.f32 %v716, %v724
    %v727 = vpack.c.bf16 %v725, %v725
    %v728 = vpack.c.bf16 %v726, %v726
    %729 = vrot.lane.b32.xlu0 %v173, 64
    %v730 = vpop.permute.xlu0 %729
    %v732 = vsel %vm267, %v727, 0
    %v735 = vsel %vm295, %v730, 0
    %737 = vmatprep.subr.bf16.mxu0 0
    %738 = vmatpush1.bf16.msra.mxu0 %v735
    %739 = vmatprep.subr.bf16.mxu0 0
    %740 = vmatpush1.bf16.msra.mxu0 0
    %741 = vmatprep.subr.bf16.mxu0 0
    %742 = vmatpush1.bf16.msra.mxu0 0
    %743 = vmatprep.subr.bf16.mxu0 0
    %744 = vmatpush1.bf16.msra.mxu0 0
    %745 = vmatprep.subr.bf16.mxu0 0
    %746 = vmatpush1.bf16.msra.mxu0 0
    %747 = vmatprep.subr.bf16.mxu0 0
    %748 = vmatpush1.bf16.msra.mxu0 0
    %749 = vmatprep.subr.bf16.mxu0 0
    %750 = vmatpush1.bf16.msra.mxu0 0
    %751 = vmatprep.subr.bf16.mxu0 0
    %752 = vmatpush1.bf16.msra.mxu0 0
    %753 = vmatprep.subr.bf16.mxu0 0
    %754 = vmatpush1.bf16.msra.mxu0 0
    %755 = vmatprep.subr.bf16.mxu0 0
    %756 = vmatpush1.bf16.msra.mxu0 0
    %757 = vmatprep.subr.bf16.mxu0 0
    %758 = vmatpush1.bf16.msra.mxu0 0
    %759 = vmatprep.subr.bf16.mxu0 0
    %760 = vmatpush1.bf16.msra.mxu0 0
    %761 = vmatprep.subr.bf16.mxu0 0
    %762 = vmatpush1.bf16.msra.mxu0 0
    %763 = vmatprep.subr.bf16.mxu0 0
    %764 = vmatpush1.bf16.msra.mxu0 0
    %765 = vmatprep.subr.bf16.mxu0 0
    %766 = vmatpush1.bf16.msra.mxu0 0
    %767 = vmatprep.subr.bf16.mxu0 0
    %768 = vmatpush1.bf16.msra.mxu0 0
    %769 = vmatprep.mubr.bf16.mxu0 0
    %770 = vmatmul.mubr.bf16.gmra.mrb[0].mxu0 %v732
    %v771 = vpop.f32.mrb[0].mxu0
    %v772 = vadd.f32 0.0, %v771
    %v773 = vpop.f32.mrb[0].mxu0
    %v774 = vpop.f32.mrb[0].mxu0
    %v775 = vpop.f32.mrb[0].mxu0
    %776 = vdwg.mxu0
    %777 = vrot.lane.b32.xlu0 %v174, 64
    %v778 = vpop.permute.xlu0 %777
    %v780 = vsel %vm267, %v728, 0
    %v783 = vsel %vm295, %v778, 0
    %785 = vmatprep.subr.bf16.mxu0 0
    %786 = vmatpush1.bf16.msra.mxu0 %v783
    %787 = vmatprep.subr.bf16.mxu0 0
    %788 = vmatpush1.bf16.msra.mxu0 0
    %789 = vmatprep.subr.bf16.mxu0 0
    %790 = vmatpush1.bf16.msra.mxu0 0
    %791 = vmatprep.subr.bf16.mxu0 0
    %792 = vmatpush1.bf16.msra.mxu0 0
    %793 = vmatprep.subr.bf16.mxu0 0
    %794 = vmatpush1.bf16.msra.mxu0 0
    %795 = vmatprep.subr.bf16.mxu0 0
    %796 = vmatpush1.bf16.msra.mxu0 0
    %797 = vmatprep.subr.bf16.mxu0 0
    %798 = vmatpush1.bf16.msra.mxu0 0
    %799 = vmatprep.subr.bf16.mxu0 0
    %800 = vmatpush1.bf16.msra.mxu0 0
    %801 = vmatprep.subr.bf16.mxu0 0
    %802 = vmatpush1.bf16.msra.mxu0 0
    %803 = vmatprep.subr.bf16.mxu0 0
    %804 = vmatpush1.bf16.msra.mxu0 0
    %805 = vmatprep.subr.bf16.mxu0 0
    %806 = vmatpush1.bf16.msra.mxu0 0
    %807 = vmatprep.subr.bf16.mxu0 0
    %808 = vmatpush1.bf16.msra.mxu0 0
    %809 = vmatprep.subr.bf16.mxu0 0
    %810 = vmatpush1.bf16.msra.mxu0 0
    %811 = vmatprep.subr.bf16.mxu0 0
    %812 = vmatpush1.bf16.msra.mxu0 0
    %813 = vmatprep.subr.bf16.mxu0 0
    %814 = vmatpush1.bf16.msra.mxu0 0
    %815 = vmatprep.subr.bf16.mxu0 0
    %816 = vmatpush1.bf16.msra.mxu0 0
    %817 = vmatprep.mubr.bf16.mxu0 0
    %818 = vmatmul.mubr.bf16.gmra.mrb[0].mxu0 %v780
    %v819 = vpop.f32.mrb[0].mxu0
    %v820 = vadd.f32 0.0, %v819
    %v821 = vpop.f32.mrb[0].mxu0
    %v822 = vpop.f32.mrb[0].mxu0
    %v823 = vpop.f32.mrb[0].mxu0
    %824 = vdwg.mxu0
    %825 = vrot.lane.b32.xlu0 %v163, 32
    %v826 = vpop.permute.xlu0 %825
    %827 = vrot.lane.b32.xlu0 %v168, 32
    %v828 = vpop.permute.xlu0 %827
    %v830 = vsel %vm69, %v826, 0
    %v833 = vsel %vm69, %v828, 0
    %835 = vmatprep.subr.bf16.mxu0 0
    %836 = vmatpush1.bf16.xpose.msra.mxu0 %v833
    %837 = vmatprep.subr.bf16.mxu0 0
    %838 = vmatpush1.bf16.xpose.msra.mxu0 0
    %839 = vmatprep.subr.bf16.mxu0 0
    %840 = vmatpush1.bf16.xpose.msra.mxu0 0
    %841 = vmatprep.subr.bf16.mxu0 0
    %842 = vmatpush1.bf16.xpose.msra.mxu0 0
    %843 = vmatprep.subr.bf16.mxu0 0
    %844 = vmatpush1.bf16.xpose.msra.mxu0 0
    %845 = vmatprep.subr.bf16.mxu0 0
    %846 = vmatpush1.bf16.xpose.msra.mxu0 0
    %847 = vmatprep.subr.bf16.mxu0 0
    %848 = vmatpush1.bf16.xpose.msra.mxu0 0
    %849 = vmatprep.subr.bf16.mxu0 0
    %850 = vmatpush1.bf16.xpose.msra.mxu0 0
    %851 = vmatprep.subr.bf16.mxu0 0
    %852 = vmatpush1.bf16.xpose.msra.mxu0 0
    %853 = vmatprep.subr.bf16.mxu0 0
    %854 = vmatpush1.bf16.xpose.msra.mxu0 0
    %855 = vmatprep.subr.bf16.mxu0 0
    %856 = vmatpush1.bf16.xpose.msra.mxu0 0
    %857 = vmatprep.subr.bf16.mxu0 0
    %858 = vmatpush1.bf16.xpose.msra.mxu0 0
    %859 = vmatprep.subr.bf16.mxu0 0
    %860 = vmatpush1.bf16.xpose.msra.mxu0 0
    %861 = vmatprep.subr.bf16.mxu0 0
    %862 = vmatpush1.bf16.xpose.msra.mxu0 0
    %863 = vmatprep.subr.bf16.mxu0 0
    %864 = vmatpush1.bf16.xpose.msra.mxu0 0
    %865 = vmatprep.subr.bf16.mxu0 0
    %866 = vmatpush1.bf16.xpose.msra.mxu0 0
    %867 = vmatprep.mubr.bf16.mxu0 0
    %868 = vmatmul.mubr.bf16.gmra.mrb[0].mxu0 %v830
    %v869 = vpop.f32.mrb[0].mxu0
    %v870 = vadd.f32 0.0, %v869
    %v871 = vpop.f32.mrb[0].mxu0
    %v872 = vpop.f32.mrb[0].mxu0
    %v873 = vpop.f32.mrb[0].mxu0
    %874 = vdwg.mxu0
    %875 = vrot.lane.b32.xlu0 %v164, 32
    %v876 = vpop.permute.xlu0 %875
    %877 = vrot.lane.b32.xlu0 %v169, 32
    %v878 = vpop.permute.xlu0 %877
    %v880 = vsel %vm69, %v876, 0
    %v883 = vsel %vm69, %v878, 0
    %885 = vmatprep.subr.bf16.mxu0 0
    %886 = vmatpush1.bf16.xpose.msra.mxu0 %v883
    %887 = vmatprep.subr.bf16.mxu0 0
    %888 = vmatpush1.bf16.xpose.msra.mxu0 0
    %889 = vmatprep.subr.bf16.mxu0 0
    %890 = vmatpush1.bf16.xpose.msra.mxu0 0
    %891 = vmatprep.subr.bf16.mxu0 0
    %892 = vmatpush1.bf16.xpose.msra.mxu0 0
    %893 = vmatprep.subr.bf16.mxu0 0
    %894 = vmatpush1.bf16.xpose.msra.mxu0 0
    %895 = vmatprep.subr.bf16.mxu0 0
    %896 = vmatpush1.bf16.xpose.msra.mxu0 0
    %897 = vmatprep.subr.bf16.mxu0 0
    %898 = vmatpush1.bf16.xpose.msra.mxu0 0
    %899 = vmatprep.subr.bf16.mxu0 0
    %900 = vmatpush1.bf16.xpose.msra.mxu0 0
    %901 = vmatprep.subr.bf16.mxu0 0
    %902 = vmatpush1.bf16.xpose.msra.mxu0 0
    %903 = vmatprep.subr.bf16.mxu0 0
    %904 = vmatpush1.bf16.xpose.msra.mxu0 0
    %905 = vmatprep.subr.bf16.mxu0 0
    %906 = vmatpush1.bf16.xpose.msra.mxu0 0
    %907 = vmatprep.subr.bf16.mxu0 0
    %908 = vmatpush1.bf16.xpose.msra.mxu0 0
    %909 = vmatprep.subr.bf16.mxu0 0
    %910 = vmatpush1.bf16.xpose.msra.mxu0 0
    %911 = vmatprep.subr.bf16.mxu0 0
    %912 = vmatpush1.bf16.xpose.msra.mxu0 0
    %913 = vmatprep.subr.bf16.mxu0 0
    %914 = vmatpush1.bf16.xpose.msra.mxu0 0
    %915 = vmatprep.subr.bf16.mxu0 0
    %916 = vmatpush1.bf16.xpose.msra.mxu0 0
    %917 = vmatprep.mubr.bf16.mxu0 0
    %918 = vmatmul.mubr.bf16.gmra.mrb[0].mxu0 %v880
    %v919 = vpop.f32.mrb[0].mxu0
    %v920 = vadd.f32 0.0, %v919
    %v921 = vpop.f32.mrb[0].mxu0
    %v922 = vpop.f32.mrb[0].mxu0
    %v923 = vpop.f32.mrb[0].mxu0
    %924 = vdwg.mxu0
    %v925 = vsel %vm267, %v870, -inf
    %926 = vmax.xlane.f32.xlu0 %v925
    %v927 = vpop.xlane.xlu0 %926
    %v928 = vsel %vm267, %v920, -inf
    %929 = vmax.xlane.f32.xlu0 %v928
    %v930 = vpop.xlane.xlu0 %929
    %v931 = vsub.f32 %v870, %v927
    %v932 = vsub.f32 %v920, %v930
    %v933 = vmul.f32 %v931, 1.442695
    %v934 = vpow.pop %v933
    %v935 = vmul.f32 %v932, 1.442695
    %v936 = vpow.pop %v935
    %v937 = vsel %vm267, %v934, 0.0
    %938 = vadd.xlane.f32.xlu0 %v937
    %v939 = vpop.xlane.xlu0 %938
    %v940 = vsel %vm267, %v936, 0.0
    %941 = vadd.xlane.f32.xlu0 %v940
    %v942 = vpop.xlane.xlu0 %941
    %v943 = vrcp.pop %v939
    %v944 = vrcp.pop %v942
    %v945 = vmul.f32 %v934, %v943
    %v946 = vmul.f32 %v936, %v944
    %v947 = vpack.c.bf16 %v945, %v945
    %v948 = vpack.c.bf16 %v946, %v946
    %949 = vrot.lane.b32.xlu0 %v173, 32
    %v950 = vpop.permute.xlu0 %949
    %v952 = vsel %vm267, %v947, 0
    %v955 = vsel %vm295, %v950, 0
    %957 = vmatprep.subr.bf16.mxu0 0
    %958 = vmatpush1.bf16.msra.mxu0 %v955
    %959 = vmatprep.subr.bf16.mxu0 0
    %960 = vmatpush1.bf16.msra.mxu0 0
    %961 = vmatprep.subr.bf16.mxu0 0
    %962 = vmatpush1.bf16.msra.mxu0 0
    %963 = vmatprep.subr.bf16.mxu0 0
    %964 = vmatpush1.bf16.msra.mxu0 0
    %965 = vmatprep.subr.bf16.mxu0 0
    %966 = vmatpush1.bf16.msra.mxu0 0
    %967 = vmatprep.subr.bf16.mxu0 0
    %968 = vmatpush1.bf16.msra.mxu0 0
    %969 = vmatprep.subr.bf16.mxu0 0
    %970 = vmatpush1.bf16.msra.mxu0 0
    %971 = vmatprep.subr.bf16.mxu0 0
    %972 = vmatpush1.bf16.msra.mxu0 0
    %973 = vmatprep.subr.bf16.mxu0 0
    %974 = vmatpush1.bf16.msra.mxu0 0
    %975 = vmatprep.subr.bf16.mxu0 0
    %976 = vmatpush1.bf16.msra.mxu0 0
    %977 = vmatprep.subr.bf16.mxu0 0
    %978 = vmatpush1.bf16.msra.mxu0 0
    %979 = vmatprep.subr.bf16.mxu0 0
    %980 = vmatpush1.bf16.msra.mxu0 0
    %981 = vmatprep.subr.bf16.mxu0 0
    %982 = vmatpush1.bf16.msra.mxu0 0
    %983 = vmatprep.subr.bf16.mxu0 0
    %984 = vmatpush1.bf16.msra.mxu0 0
    %985 = vmatprep.subr.bf16.mxu0 0
    %986 = vmatpush1.bf16.msra.mxu0 0
    %987 = vmatprep.subr.bf16.mxu0 0
    %988 = vmatpush1.bf16.msra.mxu0 0
    %989 = vmatprep.mubr.bf16.mxu0 0
    %990 = vmatmul.mubr.bf16.gmra.mrb[0].mxu0 %v952
    %v991 = vpop.f32.mrb[0].mxu0
    %v992 = vadd.f32 0.0, %v991
    %v993 = vpop.f32.mrb[0].mxu0
    %v994 = vpop.f32.mrb[0].mxu0
    %v995 = vpop.f32.mrb[0].mxu0
    %996 = vdwg.mxu0
    %997 = vrot.lane.b32.xlu0 %v174, 32
    %v998 = vpop.permute.xlu0 %997
    %v1000 = vsel %vm267, %v948, 0
    %v1003 = vsel %vm295, %v998, 0
    %1005 = vmatprep.subr.bf16.mxu0 0
    %1006 = vmatpush1.bf16.msra.mxu0 %v1003
    %1007 = vmatprep.subr.bf16.mxu0 0
    %1008 = vmatpush1.bf16.msra.mxu0 0
    %1009 = vmatprep.subr.bf16.mxu0 0
    %1010 = vmatpush1.bf16.msra.mxu0 0
    %1011 = vmatprep.subr.bf16.mxu0 0
    %1012 = vmatpush1.bf16.msra.mxu0 0
    %1013 = vmatprep.subr.bf16.mxu0 0
    %1014 = vmatpush1.bf16.msra.mxu0 0
    %1015 = vmatprep.subr.bf16.mxu0 0
    %1016 = vmatpush1.bf16.msra.mxu0 0
    %1017 = vmatprep.subr.bf16.mxu0 0
    %1018 = vmatpush1.bf16.msra.mxu0 0
    %1019 = vmatprep.subr.bf16.mxu0 0
    %1020 = vmatpush1.bf16.msra.mxu0 0
    %1021 = vmatprep.subr.bf16.mxu0 0
    %1022 = vmatpush1.bf16.msra.mxu0 0
    %1023 = vmatprep.subr.bf16.mxu0 0
    %1024 = vmatpush1.bf16.msra.mxu0 0
    %1025 = vmatprep.subr.bf16.mxu0 0
    %1026 = vmatpush1.bf16.msra.mxu0 0
    %1027 = vmatprep.subr.bf16.mxu0 0
    %1028 = vmatpush1.bf16.msra.mxu0 0
    %1029 = vmatprep.subr.bf16.mxu0 0
    %1030 = vmatpush1.bf16.msra.mxu0 0
    %1031 = vmatprep.subr.bf16.mxu0 0
    %1032 = vmatpush1.bf16.msra.mxu0 0
    %1033 = vmatprep.subr.bf16.mxu0 0
    %1034 = vmatpush1.bf16.msra.mxu0 0
    %1035 = vmatprep.subr.bf16.mxu0 0
    %1036 = vmatpush1.bf16.msra.mxu0 0
    %1037 = vmatprep.mubr.bf16.mxu0 0
    %1038 = vmatmul.mubr.bf16.gmra.mrb[0].mxu0 %v1000
    %v1039 = vpop.f32.mrb[0].mxu0
    %v1040 = vadd.f32 0.0, %v1039
    %v1041 = vpop.f32.mrb[0].mxu0
    %v1042 = vpop.f32.mrb[0].mxu0
    %v1043 = vpop.f32.mrb[0].mxu0
    %1044 = vdwg.mxu0
    %1047 = vrot.lane.b32.xlu0 %v552, 32
    %v1048 = vpop.permute.xlu0 %1047
    %1049 = vrot.lane.b32.xlu0 %v600, 32
    %v1050 = vpop.permute.xlu0 %1049
    %1055 = vrot.lane.b32.xlu0 %v772, 64
    %v1056 = vpop.permute.xlu0 %1055
    %1057 = vrot.lane.b32.xlu0 %v820, 64
    %v1058 = vpop.permute.xlu0 %1057
    %1063 = vrot.lane.b32.xlu0 %v992, 96
    %v1064 = vpop.permute.xlu0 %1063
    %1065 = vrot.lane.b32.xlu0 %v1040, 96
    %v1066 = vpop.permute.xlu0 %1065
    %v1069 = vsel %vm69, %v334, %v1048
    %v1070 = vsel %vm69, %v380, %v1050
    %vm1071 = vcmask 523264
    %v1072 = vsel %vm1071, %v1069, %v1056
    %v1073 = vsel %vm1071, %v1070, %v1058
    %vm1074 = vcmask 785408
    %v1075 = vsel %vm1074, %v1072, %v1064
    %v1076 = vsel %vm1074, %v1073, %v1066
    %v1077 = vpack.c.bf16 %v1076, %v1075
    %v1078 = vld [vmem:[%s2] sm:$0xf]
    %v1079 = vld [vmem:[%s2 + $0x4] sm:$0xf]
    %v1080 = vld [vmem:[%s2 + $0x8] sm:$0xf]
    %v1081 = vld [vmem:[%s2 + $0xc] sm:$0xf]
    %v1082 = vld [vmem:[%s2 + $0x10] sm:$0xf]
    %v1083 = vld [vmem:[%s2 + $0x14] sm:$0xf]
    %v1084 = vld [vmem:[%s2 + $0x18] sm:$0xf]
    %v1085 = vld [vmem:[%s2 + $0x1c] sm:$0xf]
    %v1086 = vld [vmem:[%s2 + $0x20] sm:$0xf]
    %v1087 = vld [vmem:[%s2 + $0x24] sm:$0xf]
    %v1088 = vld [vmem:[%s2 + $0x28] sm:$0xf]
    %v1089 = vld [vmem:[%s2 + $0x2c] sm:$0xf]
    %v1090 = vld [vmem:[%s2 + $0x30] sm:$0xf]
    %v1091 = vld [vmem:[%s2 + $0x34] sm:$0xf]
    %v1092 = vld [vmem:[%s2 + $0x38] sm:$0xf]
    %v1093 = vld [vmem:[%s2 + $0x3c] sm:$0xf]
    %v1094 = vlaneseq
    %v1095 = vshrl.u32 %v1094, 7
    %v1096 = vsub.s32 0, %v1095
    %v1097 = vrot.slane %v28, %v1096
    %v1114 = vunpack.c.l.b16 %v1078
    %v1115 = vunpack.c.l.b16 %v1079
    %v1116 = vunpack.c.l.b16 %v1080
    %v1117 = vunpack.c.l.b16 %v1081
    %v1118 = vunpack.c.l.b16 %v1082
    %v1119 = vunpack.c.l.b16 %v1083
    %v1120 = vunpack.c.l.b16 %v1084
    %v1121 = vunpack.c.l.b16 %v1085
    %v1122 = vunpack.c.l.b16 %v1086
    %v1123 = vunpack.c.l.b16 %v1087
    %v1124 = vunpack.c.l.b16 %v1088
    %v1125 = vunpack.c.l.b16 %v1089
    %v1126 = vunpack.c.l.b16 %v1090
    %v1127 = vunpack.c.l.b16 %v1091
    %v1128 = vunpack.c.l.b16 %v1092
    %v1129 = vunpack.c.l.b16 %v1093
    %v1130 = vpack.c.b16 %v1115, %v1114
    %v1131 = vpack.c.b16 %v1117, %v1116
    %v1132 = vpack.c.b16 %v1119, %v1118
    %v1133 = vpack.c.b16 %v1121, %v1120
    %v1134 = vpack.c.b16 %v1123, %v1122
    %v1135 = vpack.c.b16 %v1125, %v1124
    %v1136 = vpack.c.b16 %v1127, %v1126
    %v1137 = vpack.c.b16 %v1129, %v1128
    %1146 = vmatprep.subr.bf16.mxu0 0
    %1147 = vmatpush1.bf16.msra.mxu0 %v1130
    %1148 = vmatprep.subr.bf16.mxu0 0
    %1149 = vmatpush1.bf16.msra.mxu0 %v1131
    %1150 = vmatprep.subr.bf16.mxu0 0
    %1151 = vmatpush1.bf16.msra.mxu0 %v1132
    %1152 = vmatprep.subr.bf16.mxu0 0
    %1153 = vmatpush1.bf16.msra.mxu0 %v1133
    %1154 = vmatprep.subr.bf16.mxu0 0
    %1155 = vmatpush1.bf16.msra.mxu0 %v1134
    %1156 = vmatprep.subr.bf16.mxu0 0
    %1157 = vmatpush1.bf16.msra.mxu0 %v1135
    %1158 = vmatprep.subr.bf16.mxu0 0
    %1159 = vmatpush1.bf16.msra.mxu0 %v1136
    %1160 = vmatprep.subr.bf16.mxu0 0
    %1161 = vmatpush1.bf16.msra.mxu0 %v1137
    %1162 = vmatprep.subr.bf16.mxu0 0
    %1163 = vmatpush1.bf16.msra.mxu0 0
    %1164 = vmatprep.subr.bf16.mxu0 0
    %1165 = vmatpush1.bf16.msra.mxu0 0
    %1166 = vmatprep.subr.bf16.mxu0 0
    %1167 = vmatpush1.bf16.msra.mxu0 0
    %1168 = vmatprep.subr.bf16.mxu0 0
    %1169 = vmatpush1.bf16.msra.mxu0 0
    %1170 = vmatprep.subr.bf16.mxu0 0
    %1171 = vmatpush1.bf16.msra.mxu0 0
    %1172 = vmatprep.subr.bf16.mxu0 0
    %1173 = vmatpush1.bf16.msra.mxu0 0
    %1174 = vmatprep.subr.bf16.mxu0 0
    %1175 = vmatpush1.bf16.msra.mxu0 0
    %1176 = vmatprep.subr.bf16.mxu0 0
    %1177 = vmatpush1.bf16.msra.mxu0 0
    %1178 = vmatprep.mubr.bf16.mxu0 0
    %1179 = vmatmul.mubr.bf16.gmra.mrb[0].mxu0 %v1077
    %v1180 = vpop.f32.mrb[0].mxu0
    %v1181 = vadd.f32 %v1097, %v1180
    %v1182 = vpop.f32.mrb[0].mxu0
    %v1183 = vpop.f32.mrb[0].mxu0
    %v1184 = vadd.f32 %v1097, %v1183
    %v1185 = vpop.f32.mrb[0].mxu0
    %1186 = vdwg.mxu0
    %v1187 = vadd.f32 %v1181, %v25
    %v1188 = vadd.f32 %v1184, %v26
    %v1189 = vsel %vm69, %v1187, 0.0
    %1190 = vadd.xlane.f32.xlu0 %v1189
    %v1191 = vpop.xlane.xlu0 %1190
    %v1192 = vsel %vm69, %v1188, 0.0
    %1193 = vadd.xlane.f32.xlu0 %v1192
    %v1194 = vpop.xlane.xlu0 %1193
    %v1195 = vrcp.pop 32.0
    %v1196 = vmul.f32 %v1191, %v1195
    %v1197 = vmul.f32 %v1194, %v1195
    %v1198 = vsub.f32 %v1187, %v1196
    %v1199 = vsub.f32 %v1188, %v1197
    %v1200 = vmul.f32 %v1198, %v1198
    %v1201 = vmul.f32 %v1199, %v1199
    %v1202 = vsel %vm69, %v1200, 0.0
    %1203 = vadd.xlane.f32.xlu0 %v1202
    %v1204 = vpop.xlane.xlu0 %1203
    %v1205 = vsel %vm69, %v1201, 0.0
    %1206 = vadd.xlane.f32.xlu0 %v1205
    %v1207 = vpop.xlane.xlu0 %1206
    %v1208 = vmul.f32 %v1204, %v1195
    %v1209 = vmul.f32 %v1207, %v1195
    %v1210 = vadd.f32 %v1208, 1e-05
    %v1211 = vadd.f32 %v1209, 1e-05
    %v1212 = vrsqrt.pop %v1210
    %v1213 = vrsqrt.pop %v1211
    %v1214 = vmul.f32 %v1198, %v1212
    %v1215 = vmul.f32 %v1199, %v1213
    %v1216 = vlaneseq
    %v1217 = vshrl.u32 %v1216, 7
    %v1218 = vsub.s32 1, %v1217
    %v1219 = vrot.slane %v28, %v1218
    %v1220 = vmul.f32 %v1214, %v1219
    %v1221 = vmul.f32 %v1215, %v1219
    %v1222 = vlaneseq
    %v1223 = vshrl.u32 %v1222, 7
    %v1224 = vsub.s32 2, %v1223
    %v1225 = vrot.slane %v28, %v1224
    %v1226 = vadd.f32 %v1220, %v1225
    %v1227 = vadd.f32 %v1221, %v1225
    %v1228 = vpack.c.bf16 %v1227, %v1226
    %v1229 = vld [vmem:[%s3] sm:$0xf]
    %v1230 = vld [vmem:[%s3 + $0x4] sm:$0xf]
    %v1231 = vld [vmem:[%s3 + $0x8] sm:$0xf]
    %v1232 = vld [vmem:[%s3 + $0xc] sm:$0xf]
    %v1233 = vlaneseq
    %v1234 = vshrl.u32 %v1233, 7
    %v1235 = vsub.s32 3, %v1234
    %v1236 = vrot.slane %v28, %v1235
    %v1241 = vunpack.c.l.b16 %v1229
    %v1242 = vunpack.c.l.b16 %v1230
    %v1243 = vunpack.c.l.b16 %v1231
    %v1244 = vunpack.c.l.b16 %v1232
    %v1245 = vpack.c.b16 %v1242, %v1241
    %v1246 = vpack.c.b16 %v1244, %v1243
    %v1250 = vsel %vm69, %v1228, 0
    %1252 = vmatprep.subr.bf16.mxu0 0
    %1253 = vmatpush1.bf16.msra.mxu0 %v1245
    %1254 = vmatprep.subr.bf16.mxu0 0
    %1255 = vmatpush1.bf16.msra.mxu0 %v1246
    %1256 = vmatprep.subr.bf16.mxu0 0
    %1257 = vmatpush1.bf16.msra.mxu0 0
    %1258 = vmatprep.subr.bf16.mxu0 0
    %1259 = vmatpush1.bf16.msra.mxu0 0
    %1260 = vmatprep.subr.bf16.mxu0 0
    %1261 = vmatpush1.bf16.msra.mxu0 0
    %1262 = vmatprep.subr.bf16.mxu0 0
    %1263 = vmatpush1.bf16.msra.mxu0 0
    %1264 = vmatprep.subr.bf16.mxu0 0
    %1265 = vmatpush1.bf16.msra.mxu0 0
    %1266 = vmatprep.subr.bf16.mxu0 0
    %1267 = vmatpush1.bf16.msra.mxu0 0
    %1268 = vmatprep.subr.bf16.mxu0 0
    %1269 = vmatpush1.bf16.msra.mxu0 0
    %1270 = vmatprep.subr.bf16.mxu0 0
    %1271 = vmatpush1.bf16.msra.mxu0 0
    %1272 = vmatprep.subr.bf16.mxu0 0
    %1273 = vmatpush1.bf16.msra.mxu0 0
    %1274 = vmatprep.subr.bf16.mxu0 0
    %1275 = vmatpush1.bf16.msra.mxu0 0
    %1276 = vmatprep.subr.bf16.mxu0 0
    %1277 = vmatpush1.bf16.msra.mxu0 0
    %1278 = vmatprep.subr.bf16.mxu0 0
    %1279 = vmatpush1.bf16.msra.mxu0 0
    %1280 = vmatprep.subr.bf16.mxu0 0
    %1281 = vmatpush1.bf16.msra.mxu0 0
    %1282 = vmatprep.subr.bf16.mxu0 0
    %1283 = vmatpush1.bf16.msra.mxu0 0
    %1284 = vmatprep.mubr.bf16.mxu0 0
    %1285 = vmatmul.mubr.bf16.gmra.mrb[0].mxu0 %v1250
    %v1286 = vpop.f32.mrb[0].mxu0
    %v1287 = vadd.f32 %v1236, %v1286
    %v1288 = vpop.f32.mrb[0].mxu0
    %v1289 = vpop.f32.mrb[0].mxu0
    %v1290 = vadd.f32 %v1236, %v1289
    %v1291 = vpop.f32.mrb[0].mxu0
    %1292 = vdwg.mxu0
    %v1293 = vmax.f32 %v1287, 0.0
    %v1294 = vmax.f32 %v1290, 0.0
    %v1295 = vpack.c.bf16 %v1294, %v1293
    %v1296 = vld [vmem:[%s4] sm:$0xf]
    %v1297 = vld [vmem:[%s4 + $0x4] sm:$0xf]
    %v1298 = vld [vmem:[%s4 + $0x8] sm:$0xf]
    %v1299 = vld [vmem:[%s4 + $0xc] sm:$0xf]
    %v1300 = vld [vmem:[%s4 + $0x10] sm:$0xf]
    %v1301 = vld [vmem:[%s4 + $0x14] sm:$0xf]
    %v1302 = vld [vmem:[%s4 + $0x18] sm:$0xf]
    %v1303 = vld [vmem:[%s4 + $0x1c] sm:$0xf]
    %v1304 = vlaneseq
    %v1305 = vshrl.u32 %v1304, 7
    %v1306 = vsub.s32 4, %v1305
    %v1307 = vrot.slane %v28, %v1306
    %v1316 = vunpack.c.l.b16 %v1296
    %v1317 = vunpack.c.l.b16 %v1297
    %v1318 = vunpack.c.l.b16 %v1298
    %v1319 = vunpack.c.l.b16 %v1299
    %v1320 = vunpack.c.l.b16 %v1300
    %v1321 = vunpack.c.l.b16 %v1301
    %v1322 = vunpack.c.l.b16 %v1302
    %v1323 = vunpack.c.l.b16 %v1303
    %v1324 = vpack.c.b16 %v1317, %v1316
    %v1325 = vpack.c.b16 %v1319, %v1318
    %v1326 = vpack.c.b16 %v1321, %v1320
    %v1327 = vpack.c.b16 %v1323, %v1322
    %v1333 = vsel %vm1071, %v1295, 0
    %1335 = vmatprep.subr.bf16.mxu0 0
    %1336 = vmatpush1.bf16.msra.mxu0 %v1324
    %1337 = vmatprep.subr.bf16.mxu0 0
    %1338 = vmatpush1.bf16.msra.mxu0 %v1325
    %1339 = vmatprep.subr.bf16.mxu0 0
    %1340 = vmatpush1.bf16.msra.mxu0 %v1326
    %1341 = vmatprep.subr.bf16.mxu0 0
    %1342 = vmatpush1.bf16.msra.mxu0 %v1327
    %1343 = vmatprep.subr.bf16.mxu0 0
    %1344 = vmatpush1.bf16.msra.mxu0 0
    %1345 = vmatprep.subr.bf16.mxu0 0
    %1346 = vmatpush1.bf16.msra.mxu0 0
    %1347 = vmatprep.subr.bf16.mxu0 0
    %1348 = vmatpush1.bf16.msra.mxu0 0
    %1349 = vmatprep.subr.bf16.mxu0 0
    %1350 = vmatpush1.bf16.msra.mxu0 0
    %1351 = vmatprep.subr.bf16.mxu0 0
    %1352 = vmatpush1.bf16.msra.mxu0 0
    %1353 = vmatprep.subr.bf16.mxu0 0
    %1354 = vmatpush1.bf16.msra.mxu0 0
    %1355 = vmatprep.subr.bf16.mxu0 0
    %1356 = vmatpush1.bf16.msra.mxu0 0
    %1357 = vmatprep.subr.bf16.mxu0 0
    %1358 = vmatpush1.bf16.msra.mxu0 0
    %1359 = vmatprep.subr.bf16.mxu0 0
    %1360 = vmatpush1.bf16.msra.mxu0 0
    %1361 = vmatprep.subr.bf16.mxu0 0
    %1362 = vmatpush1.bf16.msra.mxu0 0
    %1363 = vmatprep.subr.bf16.mxu0 0
    %1364 = vmatpush1.bf16.msra.mxu0 0
    %1365 = vmatprep.subr.bf16.mxu0 0
    %1366 = vmatpush1.bf16.msra.mxu0 0
    %1367 = vmatprep.mubr.bf16.mxu0 0
    %1368 = vmatmul.mubr.bf16.gmra.mrb[0].mxu0 %v1333
    %v1369 = vpop.f32.mrb[0].mxu0
    %v1370 = vadd.f32 %v1307, %v1369
    %v1371 = vpop.f32.mrb[0].mxu0
    %v1372 = vpop.f32.mrb[0].mxu0
    %v1373 = vadd.f32 %v1307, %v1372
    %v1374 = vpop.f32.mrb[0].mxu0
    %1375 = vdwg.mxu0
    %v1376 = vadd.f32 %v1370, %v1226
    %v1377 = vadd.f32 %v1373, %v1227
    %v1378 = vsel %vm69, %v1376, 0.0
    %1379 = vadd.xlane.f32.xlu0 %v1378
    %v1380 = vpop.xlane.xlu0 %1379
    %v1381 = vsel %vm69, %v1377, 0.0
    %1382 = vadd.xlane.f32.xlu0 %v1381
    %v1383 = vpop.xlane.xlu0 %1382
    %v1384 = vmul.f32 %v1380, %v1195
    %v1385 = vmul.f32 %v1383, %v1195
    %v1386 = vsub.f32 %v1376, %v1384
    %v1387 = vsub.f32 %v1377, %v1385
    %v1388 = vmul.f32 %v1386, %v1386
    %v1389 = vmul.f32 %v1387, %v1387
    %v1390 = vsel %vm69, %v1388, 0.0
    %1391 = vadd.xlane.f32.xlu0 %v1390
    %v1392 = vpop.xlane.xlu0 %1391
    %v1393 = vsel %vm69, %v1389, 0.0
    %1394 = vadd.xlane.f32.xlu0 %v1393
    %v1395 = vpop.xlane.xlu0 %1394
    %v1396 = vmul.f32 %v1392, %v1195
    %v1397 = vmul.f32 %v1395, %v1195
    %v1398 = vadd.f32 %v1396, 1e-05
    %v1399 = vadd.f32 %v1397, 1e-05
    %v1400 = vrsqrt.pop %v1398
    %v1401 = vrsqrt.pop %v1399
    %v1402 = vmul.f32 %v1386, %v1400
    %v1403 = vmul.f32 %v1387, %v1401
    %v1404 = vlaneseq
    %v1405 = vshrl.u32 %v1404, 7
    %v1406 = vsub.s32 5, %v1405
    %v1407 = vrot.slane %v28, %v1406
    %v1408 = vmul.f32 %v1402, %v1407
    %v1409 = vmul.f32 %v1403, %v1407
    %v1410 = vlaneseq
    %v1411 = vshrl.u32 %v1410, 7
    %v1412 = vsub.s32 6, %v1411
    %v1413 = vrot.slane %v28, %v1412
    %v1414 = vadd.f32 %v1408, %v1413
    %v1415 = vadd.f32 %v1409, %v1413
    %1416 = vst.msk [vmem:[#allocation2] sm:$0xff] %vm69, %v1414
    %1417 = vst.msk [vmem:[#allocation2 + $0x8] sm:$0xff] %vm69, %v1415
    // Predicated region
    $region26: #{tpu_custom_call.1} parent=1 // pred_check
      _
    $region27: #{tpu_custom_call.1} parent=1 // pred_check_branch
      %1419 = sbr.rel (0) target = $region29
    $region28: #{tpu_custom_call.1} parent=1 // pred_region
      %s1421 = ssub.s32 256, 256
      %1422 = vsyncadd [#allocation3], %s1421
      %s1423 = sshll.u32 [#allocation2], 4
      %s1424 = int_to_ptr.vmem [resolvable:$true] %s1423
      %1429 = dma.vmem_to_hbm [thread:$0]  %s1424, 256, %s6, [#allocation3], 128, 128, 8
    $region29: #{tpu_custom_call.1} parent=1 // pred_fallthru
      _
    // Predicated region
    $region30: #{tpu_custom_call.1} parent=1 // pred_check
      _
    $region31: #{tpu_custom_call.1} parent=1 // pred_check_branch
      %1431 = sbr.rel (0) target = $region33
    $region32: #{tpu_custom_call.1} parent=1 // pred_region
      %1432 = dma.done [#allocation3], 256
    $region33: #{tpu_custom_call.1} parent=1 // pred_fallthru
      _
    %1433 = vsyncpa [#allocation3], 1

</llo_original>
